<compile_context>
chip_gen: v7x
topology: tpu7x:2x2x1
jax: 0.10.0
libtpu: 0.0.40
codegen_flags: <defaults>
</compile_context>

<pallas_src>
import functools

import jax
import jax.numpy as jnp
from jax import lax
from jax.experimental import pallas as pl
from jax.experimental.pallas import tpu as pltpu


_EPS = 1e-5


@functools.lru_cache(maxsize=None)
def _vmem_limit_bytes():
    # 3/4 of physical VMEM (96 MiB on v5e/v6e, 48 MiB on v7x), capped at 100 MiB.
    default = 48 * 1024 * 1024
    try:
        info = pltpu.get_tpu_info()
        cap = getattr(info, "vmem_capacity_bytes", None)
        if cap:
            return int(min(cap * 3 // 4, 100 * 1024 * 1024))
    except Exception:
        pass
    return default


def _cp(dims):
    return pltpu.CompilerParams(dimension_semantics=dims,
                                vmem_limit_bytes=_vmem_limit_bytes())


# ----------------------------- in-kernel helpers -----------------------------

def _layernorm(x, g, b):
    mean = jnp.mean(x, axis=-1, keepdims=True)
    var = jnp.mean(jnp.square(x - mean), axis=-1, keepdims=True)
    return (x - mean) * lax.rsqrt(var + _EPS) * g + b


def _gelu(x):
    c = jnp.float32(0.7978845608028654)  # sqrt(2/pi)
    return 0.5 * x * (1.0 + jnp.tanh(c * (x + 0.044715 * x * x * x)))


def _bf16(x):
    return x.astype(jnp.bfloat16)


# --------------------------------- kernels -----------------------------------

def _layer_kernel(x_ref, ln1g_ref, ln1b_ref, wqkv_ref, wo_ref, bo_ref,
                  ln2g_ref, ln2b_ref, w1_ref, b1_ref, w2_ref, b2_ref,
                  o_ref, ctx_ref, *, num_heads):
    # One grid step = one batch element. Whole transformer layer fused:
    #   LN1 -> fused QKV -> causal MHA -> out-proj -> residual ->
    #   LN2 -> Linear -> GELU -> Linear -> residual
    # All intermediates (incl. the 4E hidden and per-head context) stay in VMEM.
    x = x_ref[0].astype(jnp.float32)                      # (S, E)
    S, E = x.shape
    hd = E // num_heads
    scale = jnp.float32(1.0 / (hd ** 0.5))

    # ---- attention half ----
    h = _layernorm(x, ln1g_ref[...], ln1b_ref[...])
    qkv = jnp.dot(_bf16(h), wqkv_ref[...],
                  preferred_element_type=jnp.float32)     # (S, 3E) f32 acc

    row = lax.broadcasted_iota(jnp.int32, (S, S), 0)
    col = lax.broadcasted_iota(jnp.int32, (S, S), 1)
    causal = col <= row

    # TODO(synk): for long S, replace the materialized (S, S) scores with a
    # flash-style KV-tiled online softmax (m/l/acc scratch, KV grid axis).
    for hh in range(num_heads):
        lo = hh * hd
        q_h = _bf16(qkv[:, lo:lo + hd])                   # (S, hd)
        k_h = _bf16(qkv[:, E + lo:E + lo + hd])
        v_h = _bf16(qkv[:, 2 * E + lo:2 * E + lo + hd])
        s_h = lax.dot_general(q_h, k_h, (((1,), (1,)), ((), ())),
                              preferred_element_type=jnp.float32)   # (S, S)
        s_h = jnp.where(causal, s_h * scale, jnp.float32(-1e30))
        s_h = s_h - jnp.max(s_h, axis=-1, keepdims=True)
        p_h = jnp.exp(s_h)
        p_h = p_h * pl.reciprocal(jnp.sum(p_h, axis=-1, keepdims=True),
                                  approx=True)
        # Write this head's context at its static lane offset (no concatenate).
        ctx_ref[:, lo:lo + hd] = jnp.dot(_bf16(p_h), v_h,
                                         preferred_element_type=jnp.float32)

    attn = jnp.dot(_bf16(ctx_ref[...]), wo_ref[...],
                   preferred_element_type=jnp.float32)
    x_mid = attn + bo_ref[...] + x                        # residual 1

    # ---- FFN half ----
    h2 = _layernorm(x_mid, ln2g_ref[...], ln2b_ref[...])
    a = jnp.dot(_bf16(h2), w1_ref[...],
                preferred_element_type=jnp.float32) + b1_ref[...]
    a = _gelu(a)                                          # f32 (v5e: no bf16 EUP)
    ffn = jnp.dot(_bf16(a), w2_ref[...],
                  preferred_element_type=jnp.float32) + b2_ref[...]
    o_ref[0] = (ffn + x_mid).astype(o_ref.dtype)          # residual 2


def _final_head_kernel(x_ref, g_ref, b_ref, w_ref, o_ref):
    # Final LayerNorm + one lane-dense vocab tile of the output projection.
    # LN is recomputed per vocab tile (cheap VPU work vs. the MXU matmul).
    x = x_ref[...].astype(jnp.float32)
    h = _layernorm(x, g_ref[...], b_ref[...])
    o_ref[...] = jnp.dot(_bf16(h), w_ref[...],
                         preferred_element_type=jnp.float32).astype(o_ref.dtype)


# -------------------------------- wrappers -----------------------------------

def _pad_rows(x2d, block_rows):
    pad = (-x2d.shape[0]) % block_rows
    if pad:
        x2d = jnp.pad(x2d, ((0, pad), (0, 0)))
    return x2d


def layer_pallas(x, blk, *, num_heads):
    B, S, E = x.shape
    F = blk["w1"].shape[1]
    kernel = functools.partial(_layer_kernel, num_heads=num_heads)
    # TODO(synk): on v7x (64 MiB VMEM) with larger E/F, add pipeline_mode=
    # pl.Buffered(1) on the constant weight specs and/or an F-axis grid with
    # accumulation to halve resident weight VMEM.
    return pl.pallas_call(
        kernel,
        out_shape=jax.ShapeDtypeStruct((B, S, E), x.dtype),
        grid_spec=pltpu.PrefetchScalarGridSpec(
            num_scalar_prefetch=0,
            grid=(B,),
            in_specs=[
                pl.BlockSpec((1, S, E), lambda b: (b, 0, 0)),   # x
                pl.BlockSpec((1, E), lambda b: (0, 0)),         # ln1_g
                pl.BlockSpec((1, E), lambda b: (0, 0)),         # ln1_b
                pl.BlockSpec((E, 3 * E), lambda b: (0, 0)),     # wqkv (bf16)
                pl.BlockSpec((E, E), lambda b: (0, 0)),         # wo   (bf16)
                pl.BlockSpec((1, E), lambda b: (0, 0)),         # bo
                pl.BlockSpec((1, E), lambda b: (0, 0)),         # ln2_g
                pl.BlockSpec((1, E), lambda b: (0, 0)),         # ln2_b
                pl.BlockSpec((E, F), lambda b: (0, 0)),         # w1   (bf16)
                pl.BlockSpec((1, F), lambda b: (0, 0)),         # b1
                pl.BlockSpec((F, E), lambda b: (0, 0)),         # w2   (bf16)
                pl.BlockSpec((1, E), lambda b: (0, 0)),         # b2
            ],
            out_specs=pl.BlockSpec((1, S, E), lambda b: (b, 0, 0)),
            scratch_shapes=[pltpu.VMEM((S, E), jnp.float32)],   # per-head ctx
        ),
        compiler_params=_cp(("parallel",)),
    )(x, blk["ln1_g"], blk["ln1_b"], blk["wqkv"], blk["wo"], blk["bo"],
      blk["ln2_g"], blk["ln2_b"], blk["w1"], blk["b1"], blk["w2"], blk["b2"])


def final_head_pallas(x2d, g, b, w_out, *, max_block_rows=512, max_tile_v=2048):
    rows, E = x2d.shape
    V = w_out.shape[1]

    br = rows if rows <= max_block_rows else max_block_rows
    xp = _pad_rows(x2d, br)

    tv = V if V <= max_tile_v else max_tile_v            # multiple of 128 when tiled
    vpad = (-V) % tv
    wp = jnp.pad(w_out, ((0, 0), (0, vpad))) if vpad else w_out
    Vp = V + vpad

    out = pl.pallas_call(
        _final_head_kernel,
        out_shape=jax.ShapeDtypeStruct((xp.shape[0], Vp), x2d.dtype),
        grid_spec=pltpu.PrefetchScalarGridSpec(
            num_scalar_prefetch=0,
            grid=(xp.shape[0] // br, Vp // tv),
            in_specs=[
                pl.BlockSpec((br, E), lambda i, j: (i, 0)),
                pl.BlockSpec((1, E), lambda i, j: (0, 0)),
                pl.BlockSpec((1, E), lambda i, j: (0, 0)),
                pl.BlockSpec((E, tv), lambda i, j: (0, j)),    # vocab-tiled weight
            ],
            out_specs=pl.BlockSpec((br, tv), lambda i, j: (i, j)),
        ),
        compiler_params=_cp(("parallel", "parallel")),
    )(xp, g, b, wp)
    return out[:rows, :V]


def gpt_forward_pallas(params, in_idx, cfg):
    B, S = in_idx.shape
    E = cfg["emb_dim"]
    H = cfg["n_heads"]
    V = cfg["vocab_size"]

    # Batched embedding gather in XLA (per review: a per-token Pallas DMA grid
    # is pure per-step overhead). mode="clip" guards against OOB token ids.
    ids = in_idx.reshape(-1).astype(jnp.int32)
    tok = jnp.take(params["tok_emb"], ids, axis=0, mode="clip").astype(jnp.float32)
    pos = params["pos_emb"][:S].astype(jnp.float32)
    x = tok.reshape(B, S, E) + pos[None, :, :]
    # TODO(synk): dropout (drop_emb / attn dropout / drop_resid) is identity
    # here (drop_rate=0.0 / eval mode); no RNG-based dropout kernel.

    for blk in params["blocks"]:
        x = layer_pallas(x, blk, num_heads=H)

    logits = final_head_pallas(x.reshape(B * S, E), params["fin_g"],
                               params["fin_b"], params["w_out"])
    return logits.reshape(B, S, V)


# ------------------------------ params / reference ----------------------------

def init_params(key, cfg):
    E = cfg["emb_dim"]; V = cfg["vocab_size"]; C = cfg["context_length"]
    L = cfg["n_layers"]; F = 4 * E
    keys = jax.random.split(key, 3 + L)

    def w(k, shape):
        # bf16 storage: MXU-native dtype, halves HBM/VMEM weight footprint.
        return (0.02 * jax.random.normal(k, shape, dtype=jnp.float32)
                ).astype(jnp.bfloat16)

    params = {
        "tok_emb": w(keys[0], (V, E)),
        "pos_emb": w(keys[1], (C, E)),
        "w_out": w(keys[2], (E, V)),
        "fin_g": jnp.ones((1, E), jnp.float32),
        "fin_b": jnp.zeros((1, E), jnp.float32),
        "blocks": [],
    }
    for l in range(L):
        ks = jax.random.split(keys[3 + l], 6)
        wqkv = jnp.concatenate(
            [w(ks[0], (E, E)), w(ks[1], (E, E)), w(ks[2], (E, E))], axis=1)
        params["blocks"].append({
            "ln1_g": jnp.ones((1, E), jnp.float32),
            "ln1_b": jnp.zeros((1, E), jnp.float32),
            "ln2_g": jnp.ones((1, E), jnp.float32),
            "ln2_b": jnp.zeros((1, E), jnp.float32),
            "wqkv": wqkv,                                   # (E, 3E) bf16, fused
            "wo": w(ks[3], (E, E)), "bo": jnp.zeros((1, E), jnp.float32),
            "w1": w(ks[4], (E, F)), "b1": jnp.zeros((1, F), jnp.float32),
            "w2": w(ks[5], (F, E)), "b2": jnp.zeros((1, E), jnp.float32),
        })
    return params


def _layernorm_ref(x, g, b):
    mean = jnp.mean(x, axis=-1, keepdims=True)
    var = jnp.mean(jnp.square(x - mean), axis=-1, keepdims=True)
    return (x - mean) / jnp.sqrt(var + _EPS) * g + b


def _gelu_ref(x):
    c = jnp.float32(0.7978845608028654)
    return 0.5 * x * (1.0 + jnp.tanh(c * (x + 0.044715 * x ** 3)))


def gpt_forward_reference(params, in_idx, cfg):
    # Pure-JAX f32 reference (weights upcast from bf16 storage).
    B, S = in_idx.shape
    E = cfg["emb_dim"]; H = cfg["n_heads"]; hd = E // H
    f32 = lambda a: a.astype(jnp.float32)
    x = f32(params["tok_emb"])[in_idx] + f32(params["pos_emb"])[jnp.arange(S)]
    mask = jnp.tril(jnp.ones((S, S), dtype=bool))
    for blk in params["blocks"]:
        wqkv = f32(blk["wqkv"])
        wq, wk, wv = wqkv[:, :E], wqkv[:, E:2 * E], wqkv[:, 2 * E:]
        h = _layernorm_ref(x, blk["ln1_g"], blk["ln1_b"])
        q = (h @ wq).reshape(B, S, H, hd).transpose(0, 2, 1, 3)
        k = (h @ wk).reshape(B, S, H, hd).transpose(0, 2, 1, 3)
        v = (h @ wv).reshape(B, S, H, hd).transpose(0, 2, 1, 3)
        s = jnp.einsum("bhqd,bhkd->bhqk", q, k) / jnp.sqrt(jnp.float32(hd))
        s = jnp.where(mask, s, -1e30)
        w = jax.nn.softmax(s, axis=-1)
        ctx = jnp.einsum("bhqk,bhkd->bhqd", w, v).transpose(0, 2, 1, 3)
        ctx = ctx.reshape(B, S, E)
        x = ctx @ f32(blk["wo"]) + blk["bo"] + x
        h = _layernorm_ref(x, blk["ln2_g"], blk["ln2_b"])
        x = _gelu_ref(h @ f32(blk["w1"]) + blk["b1"]) @ f32(blk["w2"]) + blk["b2"] + x
    h = _layernorm_ref(x, params["fin_g"], params["fin_b"])
    return h @ f32(params["w_out"])


# ---------------------------------- main --------------------------------------

if __name__ == "__main__":
    cfg = dict(vocab_size=256, context_length=16, emb_dim=128, n_heads=4,
               n_layers=2, drop_rate=0.0, qkv_bias=False)
    key = jax.random.PRNGKey(0)
    pkey, dkey = jax.random.split(key)
    params = init_params(pkey, cfg)

    B, S = 2, 8
    in_idx = jax.random.randint(dkey, (B, S), 0, cfg["vocab_size"],
                                dtype=jnp.int32)

    logits = gpt_forward_pallas(params, in_idx, cfg)
    logits = jax.block_until_ready(logits)

    ref = gpt_forward_reference(params, in_idx, cfg)
    assert logits.shape == (B, S, cfg["vocab_size"])
    assert bool(jnp.all(jnp.isfinite(logits)))
    # Tolerance covers bf16 matmul inputs + approx-reciprocal softmax vs f32 ref.
    max_err = float(jnp.max(jnp.abs(logits - ref)))
    assert max_err < 5e-2, f"max abs diff vs reference: {max_err}"

    print("KERNEL_OK")
</pallas_src>

<mosaic_0001>
module attributes {stable_mosaic.version = 11 : i64} {
  func.func @_layer_kernel(%arg0: i32, %arg1: memref<1x8x128xf32, #tpu.memory_space<vmem>>, %arg2: memref<1x128xf32, #tpu.memory_space<vmem>>, %arg3: memref<1x128xf32, #tpu.memory_space<vmem>>, %arg4: memref<128x384xbf16, #tpu.memory_space<vmem>>, %arg5: memref<128x128xbf16, #tpu.memory_space<vmem>>, %arg6: memref<1x128xf32, #tpu.memory_space<vmem>>, %arg7: memref<1x128xf32, #tpu.memory_space<vmem>>, %arg8: memref<1x128xf32, #tpu.memory_space<vmem>>, %arg9: memref<128x512xbf16, #tpu.memory_space<vmem>>, %arg10: memref<1x512xf32, #tpu.memory_space<vmem>>, %arg11: memref<512x128xbf16, #tpu.memory_space<vmem>>, %arg12: memref<1x128xf32, #tpu.memory_space<vmem>>, %arg13: memref<1x8x128xf32, #tpu.memory_space<vmem>>, %arg14: memref<8x128xf32, #tpu.memory_space<vmem>>) attributes {dimension_semantics = [#tpu.dimension_semantics<parallel>], iteration_bounds = array<i64: 2>, scalar_prefetch = 0 : i64, scratch_operands = 1 : i64, tpu.core_type = #tpu.core_type<tc>, window_params = [{transform_indices = @transform_0, window_bounds = array<i64: 1, 8, 128>}, {pipeline_mode = #tpu.pipeline_mode<synchronous>, transform_indices = @transform_1, window_bounds = array<i64: 1, 128>}, {pipeline_mode = #tpu.pipeline_mode<synchronous>, transform_indices = @transform_2, window_bounds = array<i64: 1, 128>}, {pipeline_mode = #tpu.pipeline_mode<synchronous>, transform_indices = @transform_3, window_bounds = array<i64: 128, 384>}, {pipeline_mode = #tpu.pipeline_mode<synchronous>, transform_indices = @transform_4, window_bounds = array<i64: 128, 128>}, {pipeline_mode = #tpu.pipeline_mode<synchronous>, transform_indices = @transform_5, window_bounds = array<i64: 1, 128>}, {pipeline_mode = #tpu.pipeline_mode<synchronous>, transform_indices = @transform_6, window_bounds = array<i64: 1, 128>}, {pipeline_mode = #tpu.pipeline_mode<synchronous>, transform_indices = @transform_7, window_bounds = array<i64: 1, 128>}, {pipeline_mode = #tpu.pipeline_mode<synchronous>, transform_indices = @transform_8, window_bounds = array<i64: 128, 512>}, {pipeline_mode = #tpu.pipeline_mode<synchronous>, transform_indices = @transform_9, window_bounds = array<i64: 1, 512>}, {pipeline_mode = #tpu.pipeline_mode<synchronous>, transform_indices = @transform_10, window_bounds = array<i64: 512, 128>}, {pipeline_mode = #tpu.pipeline_mode<synchronous>, transform_indices = @transform_11, window_bounds = array<i64: 1, 128>}, {transform_indices = @transform_12, window_bounds = array<i64: 1, 8, 128>}]} {
    %c0 = arith.constant 0 : index
    %c0_0 = arith.constant 0 : index
    %c0_1 = arith.constant 0 : index
    %0 = vector.load %arg1[%c0, %c0_0, %c0_1] : memref<1x8x128xf32, #tpu.memory_space<vmem>>, vector<1x8x128xf32>
    %1 = vector.shape_cast %0 : vector<1x8x128xf32> to vector<8x128xf32>
    %c0_2 = arith.constant 0 : index
    %c0_3 = arith.constant 0 : index
    %2 = vector.load %arg2[%c0_2, %c0_3] : memref<1x128xf32, #tpu.memory_space<vmem>>, vector<1x128xf32>
    %c0_4 = arith.constant 0 : index
    %c0_5 = arith.constant 0 : index
    %3 = vector.load %arg3[%c0_4, %c0_5] : memref<1x128xf32, #tpu.memory_space<vmem>>, vector<1x128xf32>
    %cst = arith.constant dense<0.000000e+00> : vector<8xf32>
    %4 = vector.multi_reduction <add>, %1, %cst [1] : vector<8x128xf32> to vector<8xf32>
    %5 = vector.shape_cast %4 : vector<8xf32> to vector<8x1xf32>
    %cst_6 = arith.constant 1.280000e+02 : f32
    %6 = vector.broadcast %cst_6 : f32 to vector<8x1xf32>
    %7 = arith.divf %5, %6 : vector<8x1xf32>
    %8 = vector.broadcast %7 : vector<8x1xf32> to vector<8x128xf32>
    %9 = arith.subf %1, %8 : vector<8x128xf32>
    %10 = arith.mulf %9, %9 : vector<8x128xf32>
    %cst_7 = arith.constant dense<0.000000e+00> : vector<8xf32>
    %11 = vector.multi_reduction <add>, %10, %cst_7 [1] : vector<8x128xf32> to vector<8xf32>
    %12 = vector.shape_cast %11 : vector<8xf32> to vector<8x1xf32>
    %cst_8 = arith.constant 1.280000e+02 : f32
    %13 = vector.broadcast %cst_8 : f32 to vector<8x1xf32>
    %14 = arith.divf %12, %13 : vector<8x1xf32>
    %15 = vector.broadcast %7 : vector<8x1xf32> to vector<8x128xf32>
    %16 = arith.subf %1, %15 : vector<8x128xf32>
    %cst_9 = arith.constant 9.99999974E-6 : f32
    %17 = vector.broadcast %cst_9 : f32 to vector<8x1xf32>
    %18 = arith.addf %14, %17 : vector<8x1xf32>
    %19 = math.rsqrt %18 : vector<8x1xf32>
    %20 = vector.broadcast %19 : vector<8x1xf32> to vector<8x128xf32>
    %21 = arith.mulf %16, %20 : vector<8x128xf32>
    %22 = vector.broadcast %2 : vector<1x128xf32> to vector<8x128xf32>
    %23 = arith.mulf %21, %22 : vector<8x128xf32>
    %24 = vector.broadcast %3 : vector<1x128xf32> to vector<8x128xf32>
    %25 = arith.addf %23, %24 : vector<8x128xf32>
    %26 = arith.truncf %25 : vector<8x128xf32> to vector<8x128xbf16>
    %c0_10 = arith.constant 0 : index
    %c0_11 = arith.constant 0 : index
    %27 = vector.load %arg4[%c0_10, %c0_11] : memref<128x384xbf16, #tpu.memory_space<vmem>>, vector<128x384xbf16>
    %cst_12 = arith.constant dense<0.000000e+00> : vector<8x384xf32>
    %28 = tpu.matmul %26, %27, %cst_12 {dimension_numbers = #tpu.dot_dimension_numbers<[1], [0], [0], [1], [0, 0, 1, 1], [], []>} : vector<8x128xbf16>, vector<128x384xbf16>, vector<8x384xf32> -> vector<8x384xf32>
    %29 = tpu.iota {dimensions = array<i32: 0>} : vector<8x8xi32>
    %30 = tpu.iota {dimensions = array<i32: 1>} : vector<8x8xi32>
    %31 = arith.cmpi sle, %30, %29 : vector<8x8xi32>
    %32 = vector.extract_strided_slice %28 {offsets = [0, 0], sizes = [8, 32], strides = [1, 1]} : vector<8x384xf32> to vector<8x32xf32>
    %33 = arith.truncf %32 : vector<8x32xf32> to vector<8x32xbf16>
    %34 = vector.extract_strided_slice %28 {offsets = [0, 128], sizes = [8, 32], strides = [1, 1]} : vector<8x384xf32> to vector<8x32xf32>
    %35 = arith.truncf %34 : vector<8x32xf32> to vector<8x32xbf16>
    %36 = vector.extract_strided_slice %28 {offsets = [0, 256], sizes = [8, 32], strides = [1, 1]} : vector<8x384xf32> to vector<8x32xf32>
    %37 = arith.truncf %36 : vector<8x32xf32> to vector<8x32xbf16>
    %cst_13 = arith.constant dense<0.000000e+00> : vector<8x8xf32>
    %38 = tpu.matmul %33, %35, %cst_13 {dimension_numbers = #tpu.dot_dimension_numbers<[1], [1], [0], [0], [0, 0, 1, 0], [], []>} : vector<8x32xbf16>, vector<8x32xbf16>, vector<8x8xf32> -> vector<8x8xf32>
    %cst_14 = arith.constant 0.176776692 : f32
    %39 = vector.broadcast %cst_14 : f32 to vector<8x8xf32>
    %40 = arith.mulf %38, %39 : vector<8x8xf32>
    %cst_15 = arith.constant -1.000000e+30 : f32
    %41 = vector.broadcast %cst_15 : f32 to vector<8x8xf32>
    %42 = arith.select %31, %40, %41 : vector<8x8xi1>, vector<8x8xf32>
    %cst_16 = arith.constant dense<0xFF800000> : vector<8xf32>
    %43 = vector.multi_reduction <maximumf>, %42, %cst_16 [1] : vector<8x8xf32> to vector<8xf32>
    %44 = vector.shape_cast %43 : vector<8xf32> to vector<8x1xf32>
    %45 = vector.broadcast %44 : vector<8x1xf32> to vector<8x8xf32>
    %46 = arith.subf %42, %45 : vector<8x8xf32>
    %47 = math.exp %46 : vector<8x8xf32>
    %cst_17 = arith.constant dense<0.000000e+00> : vector<8xf32>
    %48 = vector.multi_reduction <add>, %47, %cst_17 [1] : vector<8x8xf32> to vector<8xf32>
    %49 = vector.shape_cast %48 : vector<8xf32> to vector<8x1xf32>
    %50 = tpu.reciprocal %49 {approx = true} : vector<8x1xf32> -> vector<8x1xf32>
    %51 = vector.broadcast %50 : vector<8x1xf32> to vector<8x8xf32>
    %52 = arith.mulf %47, %51 : vector<8x8xf32>
    %53 = arith.truncf %52 : vector<8x8xf32> to vector<8x8xbf16>
    %cst_18 = arith.constant dense<0.000000e+00> : vector<8x32xf32>
    %54 = tpu.matmul %53, %37, %cst_18 {dimension_numbers = #tpu.dot_dimension_numbers<[1], [0], [0], [1], [0, 0, 1, 1], [], []>} : vector<8x8xbf16>, vector<8x32xbf16>, vector<8x32xf32> -> vector<8x32xf32>
    %c0_19 = arith.constant 0 : index
    %c0_20 = arith.constant 0 : index
    %55 = vector.load %arg14[%c0_19, %c0_20] : memref<8x128xf32, #tpu.memory_space<vmem>>, vector<8x32xf32>
    tpu.vector_store %arg14[%c0_19, %c0_20], %54 {strides = array<i32>} : memref<8x128xf32, #tpu.memory_space<vmem>>, vector<8x32xf32>,
    %56 = vector.extract_strided_slice %28 {offsets = [0, 32], sizes = [8, 32], strides = [1, 1]} : vector<8x384xf32> to vector<8x32xf32>
    %57 = arith.truncf %56 : vector<8x32xf32> to vector<8x32xbf16>
    %58 = vector.extract_strided_slice %28 {offsets = [0, 160], sizes = [8, 32], strides = [1, 1]} : vector<8x384xf32> to vector<8x32xf32>
    %59 = arith.truncf %58 : vector<8x32xf32> to vector<8x32xbf16>
    %60 = vector.extract_strided_slice %28 {offsets = [0, 288], sizes = [8, 32], strides = [1, 1]} : vector<8x384xf32> to vector<8x32xf32>
    %61 = arith.truncf %60 : vector<8x32xf32> to vector<8x32xbf16>
    %cst_21 = arith.constant dense<0.000000e+00> : vector<8x8xf32>
    %62 = tpu.matmul %57, %59, %cst_21 {dimension_numbers = #tpu.dot_dimension_numbers<[1], [1], [0], [0], [0, 0, 1, 0], [], []>} : vector<8x32xbf16>, vector<8x32xbf16>, vector<8x8xf32> -> vector<8x8xf32>
    %cst_22 = arith.constant 0.176776692 : f32
    %63 = vector.broadcast %cst_22 : f32 to vector<8x8xf32>
    %64 = arith.mulf %62, %63 : vector<8x8xf32>
    %cst_23 = arith.constant -1.000000e+30 : f32
    %65 = vector.broadcast %cst_23 : f32 to vector<8x8xf32>
    %66 = arith.select %31, %64, %65 : vector<8x8xi1>, vector<8x8xf32>
    %cst_24 = arith.constant dense<0xFF800000> : vector<8xf32>
    %67 = vector.multi_reduction <maximumf>, %66, %cst_24 [1] : vector<8x8xf32> to vector<8xf32>
    %68 = vector.shape_cast %67 : vector<8xf32> to vector<8x1xf32>
    %69 = vector.broadcast %68 : vector<8x1xf32> to vector<8x8xf32>
    %70 = arith.subf %66, %69 : vector<8x8xf32>
    %71 = math.exp %70 : vector<8x8xf32>
    %cst_25 = arith.constant dense<0.000000e+00> : vector<8xf32>
    %72 = vector.multi_reduction <add>, %71, %cst_25 [1] : vector<8x8xf32> to vector<8xf32>
    %73 = vector.shape_cast %72 : vector<8xf32> to vector<8x1xf32>
    %74 = tpu.reciprocal %73 {approx = true} : vector<8x1xf32> -> vector<8x1xf32>
    %75 = vector.broadcast %74 : vector<8x1xf32> to vector<8x8xf32>
    %76 = arith.mulf %71, %75 : vector<8x8xf32>
    %77 = arith.truncf %76 : vector<8x8xf32> to vector<8x8xbf16>
    %cst_26 = arith.constant dense<0.000000e+00> : vector<8x32xf32>
    %78 = tpu.matmul %77, %61, %cst_26 {dimension_numbers = #tpu.dot_dimension_numbers<[1], [0], [0], [1], [0, 0, 1, 1], [], []>} : vector<8x8xbf16>, vector<8x32xbf16>, vector<8x32xf32> -> vector<8x32xf32>
    %c0_27 = arith.constant 0 : index
    %c32 = arith.constant 32 : index
    %79 = vector.load %arg14[%c0_27, %c32] : memref<8x128xf32, #tpu.memory_space<vmem>>, vector<8x32xf32>
    tpu.vector_store %arg14[%c0_27, %c32], %78 {strides = array<i32>} : memref<8x128xf32, #tpu.memory_space<vmem>>, vector<8x32xf32>,
    %80 = vector.extract_strided_slice %28 {offsets = [0, 64], sizes = [8, 32], strides = [1, 1]} : vector<8x384xf32> to vector<8x32xf32>
    %81 = arith.truncf %80 : vector<8x32xf32> to vector<8x32xbf16>
    %82 = vector.extract_strided_slice %28 {offsets = [0, 192], sizes = [8, 32], strides = [1, 1]} : vector<8x384xf32> to vector<8x32xf32>
    %83 = arith.truncf %82 : vector<8x32xf32> to vector<8x32xbf16>
    %84 = vector.extract_strided_slice %28 {offsets = [0, 320], sizes = [8, 32], strides = [1, 1]} : vector<8x384xf32> to vector<8x32xf32>
    %85 = arith.truncf %84 : vector<8x32xf32> to vector<8x32xbf16>
    %cst_28 = arith.constant dense<0.000000e+00> : vector<8x8xf32>
    %86 = tpu.matmul %81, %83, %cst_28 {dimension_numbers = #tpu.dot_dimension_numbers<[1], [1], [0], [0], [0, 0, 1, 0], [], []>} : vector<8x32xbf16>, vector<8x32xbf16>, vector<8x8xf32> -> vector<8x8xf32>
    %cst_29 = arith.constant 0.176776692 : f32
    %87 = vector.broadcast %cst_29 : f32 to vector<8x8xf32>
    %88 = arith.mulf %86, %87 : vector<8x8xf32>
    %cst_30 = arith.constant -1.000000e+30 : f32
    %89 = vector.broadcast %cst_30 : f32 to vector<8x8xf32>
    %90 = arith.select %31, %88, %89 : vector<8x8xi1>, vector<8x8xf32>
    %cst_31 = arith.constant dense<0xFF800000> : vector<8xf32>
    %91 = vector.multi_reduction <maximumf>, %90, %cst_31 [1] : vector<8x8xf32> to vector<8xf32>
    %92 = vector.shape_cast %91 : vector<8xf32> to vector<8x1xf32>
    %93 = vector.broadcast %92 : vector<8x1xf32> to vector<8x8xf32>
    %94 = arith.subf %90, %93 : vector<8x8xf32>
    %95 = math.exp %94 : vector<8x8xf32>
    %cst_32 = arith.constant dense<0.000000e+00> : vector<8xf32>
    %96 = vector.multi_reduction <add>, %95, %cst_32 [1] : vector<8x8xf32> to vector<8xf32>
    %97 = vector.shape_cast %96 : vector<8xf32> to vector<8x1xf32>
    %98 = tpu.reciprocal %97 {approx = true} : vector<8x1xf32> -> vector<8x1xf32>
    %99 = vector.broadcast %98 : vector<8x1xf32> to vector<8x8xf32>
    %100 = arith.mulf %95, %99 : vector<8x8xf32>
    %101 = arith.truncf %100 : vector<8x8xf32> to vector<8x8xbf16>
    %cst_33 = arith.constant dense<0.000000e+00> : vector<8x32xf32>
    %102 = tpu.matmul %101, %85, %cst_33 {dimension_numbers = #tpu.dot_dimension_numbers<[1], [0], [0], [1], [0, 0, 1, 1], [], []>} : vector<8x8xbf16>, vector<8x32xbf16>, vector<8x32xf32> -> vector<8x32xf32>
    %c0_34 = arith.constant 0 : index
    %c64 = arith.constant 64 : index
    %103 = vector.load %arg14[%c0_34, %c64] : memref<8x128xf32, #tpu.memory_space<vmem>>, vector<8x32xf32>
    tpu.vector_store %arg14[%c0_34, %c64], %102 {strides = array<i32>} : memref<8x128xf32, #tpu.memory_space<vmem>>, vector<8x32xf32>,
    %104 = vector.extract_strided_slice %28 {offsets = [0, 96], sizes = [8, 32], strides = [1, 1]} : vector<8x384xf32> to vector<8x32xf32>
    %105 = arith.truncf %104 : vector<8x32xf32> to vector<8x32xbf16>
    %106 = vector.extract_strided_slice %28 {offsets = [0, 224], sizes = [8, 32], strides = [1, 1]} : vector<8x384xf32> to vector<8x32xf32>
    %107 = arith.truncf %106 : vector<8x32xf32> to vector<8x32xbf16>
    %108 = vector.extract_strided_slice %28 {offsets = [0, 352], sizes = [8, 32], strides = [1, 1]} : vector<8x384xf32> to vector<8x32xf32>
    %109 = arith.truncf %108 : vector<8x32xf32> to vector<8x32xbf16>
    %cst_35 = arith.constant dense<0.000000e+00> : vector<8x8xf32>
    %110 = tpu.matmul %105, %107, %cst_35 {dimension_numbers = #tpu.dot_dimension_numbers<[1], [1], [0], [0], [0, 0, 1, 0], [], []>} : vector<8x32xbf16>, vector<8x32xbf16>, vector<8x8xf32> -> vector<8x8xf32>
    %cst_36 = arith.constant 0.176776692 : f32
    %111 = vector.broadcast %cst_36 : f32 to vector<8x8xf32>
    %112 = arith.mulf %110, %111 : vector<8x8xf32>
    %cst_37 = arith.constant -1.000000e+30 : f32
    %113 = vector.broadcast %cst_37 : f32 to vector<8x8xf32>
    %114 = arith.select %31, %112, %113 : vector<8x8xi1>, vector<8x8xf32>
    %cst_38 = arith.constant dense<0xFF800000> : vector<8xf32>
    %115 = vector.multi_reduction <maximumf>, %114, %cst_38 [1] : vector<8x8xf32> to vector<8xf32>
    %116 = vector.shape_cast %115 : vector<8xf32> to vector<8x1xf32>
    %117 = vector.broadcast %116 : vector<8x1xf32> to vector<8x8xf32>
    %118 = arith.subf %114, %117 : vector<8x8xf32>
    %119 = math.exp %118 : vector<8x8xf32>
    %cst_39 = arith.constant dense<0.000000e+00> : vector<8xf32>
    %120 = vector.multi_reduction <add>, %119, %cst_39 [1] : vector<8x8xf32> to vector<8xf32>
    %121 = vector.shape_cast %120 : vector<8xf32> to vector<8x1xf32>
    %122 = tpu.reciprocal %121 {approx = true} : vector<8x1xf32> -> vector<8x1xf32>
    %123 = vector.broadcast %122 : vector<8x1xf32> to vector<8x8xf32>
    %124 = arith.mulf %119, %123 : vector<8x8xf32>
    %125 = arith.truncf %124 : vector<8x8xf32> to vector<8x8xbf16>
    %cst_40 = arith.constant dense<0.000000e+00> : vector<8x32xf32>
    %126 = tpu.matmul %125, %109, %cst_40 {dimension_numbers = #tpu.dot_dimension_numbers<[1], [0], [0], [1], [0, 0, 1, 1], [], []>} : vector<8x8xbf16>, vector<8x32xbf16>, vector<8x32xf32> -> vector<8x32xf32>
    %c0_41 = arith.constant 0 : index
    %c96 = arith.constant 96 : index
    %127 = vector.load %arg14[%c0_41, %c96] : memref<8x128xf32, #tpu.memory_space<vmem>>, vector<8x32xf32>
    tpu.vector_store %arg14[%c0_41, %c96], %126 {strides = array<i32>} : memref<8x128xf32, #tpu.memory_space<vmem>>, vector<8x32xf32>,
    %c0_42 = arith.constant 0 : index
    %c0_43 = arith.constant 0 : index
    %128 = vector.load %arg14[%c0_42, %c0_43] : memref<8x128xf32, #tpu.memory_space<vmem>>, vector<8x128xf32>
    %129 = arith.truncf %128 : vector<8x128xf32> to vector<8x128xbf16>
    %c0_44 = arith.constant 0 : index
    %c0_45 = arith.constant 0 : index
    %130 = vector.load %arg5[%c0_44, %c0_45] : memref<128x128xbf16, #tpu.memory_space<vmem>>, vector<128x128xbf16>
    %cst_46 = arith.constant dense<0.000000e+00> : vector<8x128xf32>
    %131 = tpu.matmul %129, %130, %cst_46 {dimension_numbers = #tpu.dot_dimension_numbers<[1], [0], [0], [1], [0, 0, 1, 1], [], []>} : vector<8x128xbf16>, vector<128x128xbf16>, vector<8x128xf32> -> vector<8x128xf32>
    %c0_47 = arith.constant 0 : index
    %c0_48 = arith.constant 0 : index
    %132 = vector.load %arg6[%c0_47, %c0_48] : memref<1x128xf32, #tpu.memory_space<vmem>>, vector<1x128xf32>
    %133 = vector.broadcast %132 : vector<1x128xf32> to vector<8x128xf32>
    %134 = arith.addf %131, %133 : vector<8x128xf32>
    %135 = arith.addf %134, %1 : vector<8x128xf32>
    %c0_49 = arith.constant 0 : index
    %c0_50 = arith.constant 0 : index
    %136 = vector.load %arg7[%c0_49, %c0_50] : memref<1x128xf32, #tpu.memory_space<vmem>>, vector<1x128xf32>
    %c0_51 = arith.constant 0 : index
    %c0_52 = arith.constant 0 : index
    %137 = vector.load %arg8[%c0_51, %c0_52] : memref<1x128xf32, #tpu.memory_space<vmem>>, vector<1x128xf32>
    %cst_53 = arith.constant dense<0.000000e+00> : vector<8xf32>
    %138 = vector.multi_reduction <add>, %135, %cst_53 [1] : vector<8x128xf32> to vector<8xf32>
    %139 = vector.shape_cast %138 : vector<8xf32> to vector<8x1xf32>
    %cst_54 = arith.constant 1.280000e+02 : f32
    %140 = vector.broadcast %cst_54 : f32 to vector<8x1xf32>
    %141 = arith.divf %139, %140 : vector<8x1xf32>
    %142 = vector.broadcast %141 : vector<8x1xf32> to vector<8x128xf32>
    %143 = arith.subf %135, %142 : vector<8x128xf32>
    %144 = arith.mulf %143, %143 : vector<8x128xf32>
    %cst_55 = arith.constant dense<0.000000e+00> : vector<8xf32>
    %145 = vector.multi_reduction <add>, %144, %cst_55 [1] : vector<8x128xf32> to vector<8xf32>
    %146 = vector.shape_cast %145 : vector<8xf32> to vector<8x1xf32>
    %cst_56 = arith.constant 1.280000e+02 : f32
    %147 = vector.broadcast %cst_56 : f32 to vector<8x1xf32>
    %148 = arith.divf %146, %147 : vector<8x1xf32>
    %149 = vector.broadcast %141 : vector<8x1xf32> to vector<8x128xf32>
    %150 = arith.subf %135, %149 : vector<8x128xf32>
    %cst_57 = arith.constant 9.99999974E-6 : f32
    %151 = vector.broadcast %cst_57 : f32 to vector<8x1xf32>
    %152 = arith.addf %148, %151 : vector<8x1xf32>
    %153 = math.rsqrt %152 : vector<8x1xf32>
    %154 = vector.broadcast %153 : vector<8x1xf32> to vector<8x128xf32>
    %155 = arith.mulf %150, %154 : vector<8x128xf32>
    %156 = vector.broadcast %136 : vector<1x128xf32> to vector<8x128xf32>
    %157 = arith.mulf %155, %156 : vector<8x128xf32>
    %158 = vector.broadcast %137 : vector<1x128xf32> to vector<8x128xf32>
    %159 = arith.addf %157, %158 : vector<8x128xf32>
    %160 = arith.truncf %159 : vector<8x128xf32> to vector<8x128xbf16>
    %c0_58 = arith.constant 0 : index
    %c0_59 = arith.constant 0 : index
    %161 = vector.load %arg9[%c0_58, %c0_59] : memref<128x512xbf16, #tpu.memory_space<vmem>>, vector<128x512xbf16>
    %cst_60 = arith.constant dense<0.000000e+00> : vector<8x512xf32>
    %162 = tpu.matmul %160, %161, %cst_60 {dimension_numbers = #tpu.dot_dimension_numbers<[1], [0], [0], [1], [0, 0, 1, 1], [], []>} : vector<8x128xbf16>, vector<128x512xbf16>, vector<8x512xf32> -> vector<8x512xf32>
    %c0_61 = arith.constant 0 : index
    %c0_62 = arith.constant 0 : index
    %163 = vector.load %arg10[%c0_61, %c0_62] : memref<1x512xf32, #tpu.memory_space<vmem>>, vector<1x512xf32>
    %164 = vector.broadcast %163 : vector<1x512xf32> to vector<8x512xf32>
    %165 = arith.addf %162, %164 : vector<8x512xf32>
    %cst_63 = arith.constant 5.000000e-01 : f32
    %166 = vector.broadcast %cst_63 : f32 to vector<8x512xf32>
    %167 = arith.mulf %166, %165 : vector<8x512xf32>
    %cst_64 = arith.constant 4.471500e-02 : f32
    %168 = vector.broadcast %cst_64 : f32 to vector<8x512xf32>
    %169 = arith.mulf %168, %165 : vector<8x512xf32>
    %170 = arith.mulf %169, %165 : vector<8x512xf32>
    %171 = arith.mulf %170, %165 : vector<8x512xf32>
    %172 = arith.addf %165, %171 : vector<8x512xf32>
    %cst_65 = arith.constant 0.797884583 : f32
    %173 = vector.broadcast %cst_65 : f32 to vector<8x512xf32>
    %174 = arith.mulf %173, %172 : vector<8x512xf32>
    %175 = math.tanh %174 : vector<8x512xf32>
    %cst_66 = arith.constant 1.000000e+00 : f32
    %176 = vector.broadcast %cst_66 : f32 to vector<8x512xf32>
    %177 = arith.addf %176, %175 : vector<8x512xf32>
    %178 = arith.mulf %167, %177 : vector<8x512xf32>
    %179 = arith.truncf %178 : vector<8x512xf32> to vector<8x512xbf16>
    %c0_67 = arith.constant 0 : index
    %c0_68 = arith.constant 0 : index
    %180 = vector.load %arg11[%c0_67, %c0_68] : memref<512x128xbf16, #tpu.memory_space<vmem>>, vector<512x128xbf16>
    %cst_69 = arith.constant dense<0.000000e+00> : vector<8x128xf32>
    %181 = tpu.matmul %179, %180, %cst_69 {dimension_numbers = #tpu.dot_dimension_numbers<[1], [0], [0], [1], [0, 0, 1, 1], [], []>} : vector<8x512xbf16>, vector<512x128xbf16>, vector<8x128xf32> -> vector<8x128xf32>
    %c0_70 = arith.constant 0 : index
    %c0_71 = arith.constant 0 : index
    %182 = vector.load %arg12[%c0_70, %c0_71] : memref<1x128xf32, #tpu.memory_space<vmem>>, vector<1x128xf32>
    %183 = vector.broadcast %182 : vector<1x128xf32> to vector<8x128xf32>
    %184 = arith.addf %181, %183 : vector<8x128xf32>
    %185 = arith.addf %184, %135 : vector<8x128xf32>
    %c0_72 = arith.constant 0 : index
    %c0_73 = arith.constant 0 : index
    %c0_74 = arith.constant 0 : index
    %186 = vector.load %arg13[%c0_72, %c0_73, %c0_74] : memref<1x8x128xf32, #tpu.memory_space<vmem>>, vector<1x8x128xf32>
    %187 = vector.shape_cast %186 : vector<1x8x128xf32> to vector<8x128xf32>
    %188 = vector.shape_cast %185 : vector<8x128xf32> to vector<1x8x128xf32>
    tpu.vector_store %arg13[%c0_72, %c0_73, %c0_74], %188 {strides = array<i32>} : memref<1x8x128xf32, #tpu.memory_space<vmem>>, vector<1x8x128xf32>,
    return
  }
  func.func @transform_0(%arg0: i32) -> (i32, i32, i32) {
    %c0_i32 = arith.constant 0 : i32
    %c0_i32_0 = arith.constant 0 : i32
    %c0_i32_1 = arith.constant 0 : i32
    return %arg0, %c0_i32, %c0_i32_0 : i32, i32, i32
  }
  func.func @transform_1(%arg0: i32) -> (i32, i32) {
    %c0_i32 = arith.constant 0 : i32
    %c0_i32_0 = arith.constant 0 : i32
    %c0_i32_1 = arith.constant 0 : i32
    return %c0_i32, %c0_i32_0 : i32, i32
  }
  func.func @transform_2(%arg0: i32) -> (i32, i32) {
    %c0_i32 = arith.constant 0 : i32
    %c0_i32_0 = arith.constant 0 : i32
    %c0_i32_1 = arith.constant 0 : i32
    return %c0_i32, %c0_i32_0 : i32, i32
  }
  func.func @transform_3(%arg0: i32) -> (i32, i32) {
    %c0_i32 = arith.constant 0 : i32
    %c0_i32_0 = arith.constant 0 : i32
    %c0_i32_1 = arith.constant 0 : i32
    return %c0_i32, %c0_i32_0 : i32, i32
  }
  func.func @transform_4(%arg0: i32) -> (i32, i32) {
    %c0_i32 = arith.constant 0 : i32
    %c0_i32_0 = arith.constant 0 : i32
    %c0_i32_1 = arith.constant 0 : i32
    return %c0_i32, %c0_i32_0 : i32, i32
  }
  func.func @transform_5(%arg0: i32) -> (i32, i32) {
    %c0_i32 = arith.constant 0 : i32
    %c0_i32_0 = arith.constant 0 : i32
    %c0_i32_1 = arith.constant 0 : i32
    return %c0_i32, %c0_i32_0 : i32, i32
  }
  func.func @transform_6(%arg0: i32) -> (i32, i32) {
    %c0_i32 = arith.constant 0 : i32
    %c0_i32_0 = arith.constant 0 : i32
    %c0_i32_1 = arith.constant 0 : i32
    return %c0_i32, %c0_i32_0 : i32, i32
  }
  func.func @transform_7(%arg0: i32) -> (i32, i32) {
    %c0_i32 = arith.constant 0 : i32
    %c0_i32_0 = arith.constant 0 : i32
    %c0_i32_1 = arith.constant 0 : i32
    return %c0_i32, %c0_i32_0 : i32, i32
  }
  func.func @transform_8(%arg0: i32) -> (i32, i32) {
    %c0_i32 = arith.constant 0 : i32
    %c0_i32_0 = arith.constant 0 : i32
    %c0_i32_1 = arith.constant 0 : i32
    return %c0_i32, %c0_i32_0 : i32, i32
  }
  func.func @transform_9(%arg0: i32) -> (i32, i32) {
    %c0_i32 = arith.constant 0 : i32
    %c0_i32_0 = arith.constant 0 : i32
    %c0_i32_1 = arith.constant 0 : i32
    return %c0_i32, %c0_i32_0 : i32, i32
  }
  func.func @transform_10(%arg0: i32) -> (i32, i32) {
    %c0_i32 = arith.constant 0 : i32
    %c0_i32_0 = arith.constant 0 : i32
    %c0_i32_1 = arith.constant 0 : i32
    return %c0_i32, %c0_i32_0 : i32, i32
  }
  func.func @transform_11(%arg0: i32) -> (i32, i32) {
    %c0_i32 = arith.constant 0 : i32
    %c0_i32_0 = arith.constant 0 : i32
    %c0_i32_1 = arith.constant 0 : i32
    return %c0_i32, %c0_i32_0 : i32, i32
  }
  func.func @transform_12(%arg0: i32) -> (i32, i32, i32) {
    %c0_i32 = arith.constant 0 : i32
    %c0_i32_0 = arith.constant 0 : i32
    %c0_i32_1 = arith.constant 0 : i32
    return %arg0, %c0_i32, %c0_i32_0 : i32, i32, i32
  }
}

</mosaic_0001>

<llo_original>
// kernel: tpu_custom_call.1
$region0: #{tpu_custom_call.1}
  #allocation0 [shape = 'u32[]', space=smem, size = 0x4, offset = 0x4, fixed_abs, tag = 'smem constant byte address 0x4 - core index']
  #allocation1 [shape = 'u32[144,128]{1,0:T(1,128)}', space=vmem, size = 0x12000, scoped, tag = 'internal scratch']
  #allocation2 [shape = 'f32[8,128]{1,0:T(8,128)}', space=vmem, size = 0x1000, scoped, tag = 'scratch operand']
  %s0 = inlined_call_operand.hbm [shape: f32[2,8,128], index: 0, kind: input, shape index: {}]
  %s1 = inlined_call_operand.vmem [shape: f32[1,128], index: 1, kind: input, shape index: {}]
  %s2 = inlined_call_operand.vmem [shape: f32[1,128], index: 2, kind: input, shape index: {}]
  %s3 = inlined_call_operand.hbm [shape: bf16[128,384], index: 3, kind: input, shape index: {}]
  %s4 = inlined_call_operand.hbm [shape: bf16[128,128], index: 4, kind: input, shape index: {}]
  %s5 = inlined_call_operand.vmem [shape: f32[1,128], index: 5, kind: input, shape index: {}]
  %s6 = inlined_call_operand.vmem [shape: f32[1,128], index: 6, kind: input, shape index: {}]
  %s7 = inlined_call_operand.vmem [shape: f32[1,128], index: 7, kind: input, shape index: {}]
  %s8 = inlined_call_operand.hbm [shape: bf16[128,512], index: 8, kind: input, shape index: {}]
  %s9 = inlined_call_operand.vmem [shape: f32[1,512], index: 9, kind: input, shape index: {}]
  %s10 = inlined_call_operand.hbm [shape: bf16[512,128], index: 10, kind: input, shape index: {}]
  %s11 = inlined_call_operand.vmem [shape: f32[1,128], index: 11, kind: input, shape index: {}]
  %s12 = inlined_call_operand.hbm [shape: f32[2,8,128], index: 12, kind: output, shape index: {}]
  %s13 = sld [smem:[#allocation0]]
  $region101: #{tpu_custom_call.1} parent=0
    _
  %s15 = ssub.s32 1, %s13
  %s16 = scalar_select 0, %s15, %s13
  $region1: #{tpu_custom_call.1} parent=0
    #allocation3 [shape = 'u8[8192]{0}', space=vmem, size = 0x2000, scoped, tag = 'input window, operand 0']
    #allocation4 [shape = 's32[2]{0}', space=sflag, size = 0x8, scoped, tag = 'scoped memory for tpu_custom_call.1']
    #allocation5 [shape = 's32[2]{0}', space=sflag, size = 0x8, scoped, tag = 'scoped memory for tpu_custom_call.1']
    #allocation6 [shape = 'u8[98304]{0}', space=vmem, size = 0x18000, scoped, tag = 'input window, operand 3, single buffered']
    #allocation7 [shape = 's32[1]{0}', space=sflag, size = 0x4, scoped, tag = 'scoped memory for tpu_custom_call.1']
    #allocation8 [shape = 'u8[32768]{0}', space=vmem, size = 0x8000, scoped, tag = 'input window, operand 4, single buffered']
    #allocation9 [shape = 'u8[131072]{0}', space=vmem, size = 0x20000, scoped, tag = 'input window, operand 8, single buffered']
    #allocation10 [shape = 's32[1]{0}', space=sflag, size = 0x4, scoped, tag = 'scoped memory for tpu_custom_call.1']
    #allocation11 [shape = 'u8[131072]{0}', space=vmem, size = 0x20000, scoped, tag = 'input window, operand 10, single buffered']
    #allocation12 [shape = 'u8[8192]{0}', space=vmem, size = 0x2000, scoped, tag = 'output window, operand 0']
    %17 = vsyncpa [#allocation4], 0
    %s18 = scalar_lea.sflag [#allocation4], 1
    %19 = vsyncpa %s18, 0
    %20 = vsyncpa [#allocation7], 0
    %21 = vsyncpa [#allocation10], 0
    %22 = vsyncpa [#allocation5], 0
    %s23 = scalar_lea.sflag [#allocation5], 1
    %24 = vsyncpa %s23, 0
    loop: start=0, step=1, limit=4
    $region2: #{tpu_custom_call.1} parent=1 // loop_pre_header
      _
    $region3: #{tpu_custom_call.1} parent=1 // loop_header
      %s26 = sphi 0, %s30
      %p27 = scmp.ge.s32.totalorder %s26, 4
      %s36 = sphi 0, %s38
      %s39 = sphi 0, %s36
      %s40 = sphi 0, %s39
      %s56 = sphi 0, %s40
      %s60 = sphi 0, %s60
      %s62 = sphi 0, %s60
      %s63 = sphi 0, %s62
      %s77 = sphi 0, %s63
      %s81 = sphi 0, %s81
      %s83 = sphi 0, %s81
      %s84 = sphi 0, %s83
      %s98 = sphi 0, %s84
      %s102 = sphi 0, %s102
      %s104 = sphi 0, %s102
      %s105 = sphi 0, %s104
      %s119 = sphi 0, %s105
      %s123 = sphi 0, %s123
      %s125 = sphi 0, %s123
      %s126 = sphi 0, %s125
      %s140 = sphi 0, %s126
      %s144 = sphi 0, %s144
      %s146 = sphi 0, %s144
      %s147 = sphi 0, %s146
      %s161 = sphi 0, %s147
      %s165 = sphi 0, %s165
      %s167 = sphi 0, %s165
      %s168 = sphi 0, %s167
      %s182 = sphi 0, %s168
      %s186 = sphi 0, %s186
      %s188 = sphi 0, %s186
      %s189 = sphi 0, %s188
      %s203 = sphi 0, %s189
      %s207 = sphi 0, %s207
      %s209 = sphi 0, %s207
      %s210 = sphi 0, %s209
      %s224 = sphi 0, %s210
      %s228 = sphi 0, %s228
      %s230 = sphi 0, %s228
      %s231 = sphi 0, %s230
      %s245 = sphi 0, %s231
      %s249 = sphi 0, %s249
      %s251 = sphi 0, %s249
      %s252 = sphi 0, %s251
      %s266 = sphi 0, %s252
      %s270 = sphi 0, %s270
      %s272 = sphi 0, %s270
      %s273 = sphi 0, %s272
      %s287 = sphi 0, %s273
      %s293 = sphi 0, %s295
      %s296 = sphi 0, %s293
      %s297 = sphi 0, %s296
      %s313 = sphi 0, %s297
    $region4: #{tpu_custom_call.1} parent=1 // loop_header_branch
      %29 = sbr.rel (%p27) target = $region8
    $region5: #{tpu_custom_call.1} parent=1 // loop_body
      %s31 = ssub.s32 %s26, 1
      %s32 = ssub.s32 %s26, 2
      %s33 = sadd.s32 %s26, 1
      %s34 = ssub.s32 %s26, %s33
      %p35 = scmp.eq.s32.totalorder %s34, 0
      %s37 = sadd.s32 %s36, 1
      %s38 = scalar_select %p35, %s36, %s37
      %p41 = pneg %p35
      %p42 = scmp.eq.s32.totalorder %s26, 1
      %p43 = por %p41, %p42
      %p44 = scmp.ne.s32.totalorder %s36, %s39
      %p45 = scmp.eq.s32.totalorder %s26, 0
      %p46 = por %p44, %p45
      %p47 = scmp.ne.s32.totalorder %s36, %s39
      %p48 = scmp.eq.s32.totalorder %s31, 1
      %p49 = por %p47, %p48
      %p50 = scmp.ne.s32.totalorder %s39, %s40
      %p51 = scmp.eq.s32.totalorder %s31, 0
      %p52 = por %p50, %p51
      %p53 = scmp.ne.s32.totalorder %s39, %s40
      %p54 = scmp.eq.s32.totalorder %s32, 1
      %p55 = por %p53, %p54
      %p57 = scmp.ne.s32.totalorder %s40, %s56
      %p58 = scmp.eq.s32.totalorder %s32, 0
      %p59 = por %p57, %p58
      %s61 = sadd.s32 %s60, 1
      %p64 = scmp.eq.s32.totalorder %s26, 1
      %p65 = scmp.ne.s32.totalorder %s60, %s62
      %p66 = scmp.eq.s32.totalorder %s26, 0
      %p67 = por %p65, %p66
      %p68 = scmp.ne.s32.totalorder %s60, %s62
      %p69 = scmp.eq.s32.totalorder %s31, 1
      %p70 = por %p68, %p69
      %p71 = scmp.ne.s32.totalorder %s62, %s63
      %p72 = scmp.eq.s32.totalorder %s31, 0
      %p73 = por %p71, %p72
      %p74 = scmp.ne.s32.totalorder %s62, %s63
      %p75 = scmp.eq.s32.totalorder %s32, 1
      %p76 = por %p74, %p75
      %p78 = scmp.ne.s32.totalorder %s63, %s77
      %p79 = scmp.eq.s32.totalorder %s32, 0
      %p80 = por %p78, %p79
      %s82 = sadd.s32 %s81, 1
      %p85 = scmp.eq.s32.totalorder %s26, 1
      %p86 = scmp.ne.s32.totalorder %s81, %s83
      %p87 = scmp.eq.s32.totalorder %s26, 0
      %p88 = por %p86, %p87
      %p89 = scmp.ne.s32.totalorder %s81, %s83
      %p90 = scmp.eq.s32.totalorder %s31, 1
      %p91 = por %p89, %p90
      %p92 = scmp.ne.s32.totalorder %s83, %s84
      %p93 = scmp.eq.s32.totalorder %s31, 0
      %p94 = por %p92, %p93
      %p95 = scmp.ne.s32.totalorder %s83, %s84
      %p96 = scmp.eq.s32.totalorder %s32, 1
      %p97 = por %p95, %p96
      %p99 = scmp.ne.s32.totalorder %s84, %s98
      %p100 = scmp.eq.s32.totalorder %s32, 0
      %p101 = por %p99, %p100
      %s103 = sadd.s32 %s102, 1
      %p106 = scmp.eq.s32.totalorder %s26, 1
      %p107 = scmp.ne.s32.totalorder %s102, %s104
      %p108 = scmp.eq.s32.totalorder %s26, 0
      %p109 = por %p107, %p108
      %p110 = scmp.ne.s32.totalorder %s102, %s104
      %p111 = scmp.eq.s32.totalorder %s31, 1
      %p112 = por %p110, %p111
      %p113 = scmp.ne.s32.totalorder %s104, %s105
      %p114 = scmp.eq.s32.totalorder %s31, 0
      %p115 = por %p113, %p114
      %p116 = scmp.ne.s32.totalorder %s104, %s105
      %p117 = scmp.eq.s32.totalorder %s32, 1
      %p118 = por %p116, %p117
      %p120 = scmp.ne.s32.totalorder %s105, %s119
      %p121 = scmp.eq.s32.totalorder %s32, 0
      %p122 = por %p120, %p121
      %s124 = sadd.s32 %s123, 1
      %p127 = scmp.eq.s32.totalorder %s26, 1
      %p128 = scmp.ne.s32.totalorder %s123, %s125
      %p129 = scmp.eq.s32.totalorder %s26, 0
      %p130 = por %p128, %p129
      %p131 = scmp.ne.s32.totalorder %s123, %s125
      %p132 = scmp.eq.s32.totalorder %s31, 1
      %p133 = por %p131, %p132
      %p134 = scmp.ne.s32.totalorder %s125, %s126
      %p135 = scmp.eq.s32.totalorder %s31, 0
      %p136 = por %p134, %p135
      %p137 = scmp.ne.s32.totalorder %s125, %s126
      %p138 = scmp.eq.s32.totalorder %s32, 1
      %p139 = por %p137, %p138
      %p141 = scmp.ne.s32.totalorder %s126, %s140
      %p142 = scmp.eq.s32.totalorder %s32, 0
      %p143 = por %p141, %p142
      %s145 = sadd.s32 %s144, 1
      %p148 = scmp.eq.s32.totalorder %s26, 1
      %p149 = scmp.ne.s32.totalorder %s144, %s146
      %p150 = scmp.eq.s32.totalorder %s26, 0
      %p151 = por %p149, %p150
      %p152 = scmp.ne.s32.totalorder %s144, %s146
      %p153 = scmp.eq.s32.totalorder %s31, 1
      %p154 = por %p152, %p153
      %p155 = scmp.ne.s32.totalorder %s146, %s147
      %p156 = scmp.eq.s32.totalorder %s31, 0
      %p157 = por %p155, %p156
      %p158 = scmp.ne.s32.totalorder %s146, %s147
      %p159 = scmp.eq.s32.totalorder %s32, 1
      %p160 = por %p158, %p159
      %p162 = scmp.ne.s32.totalorder %s147, %s161
      %p163 = scmp.eq.s32.totalorder %s32, 0
      %p164 = por %p162, %p163
      %s166 = sadd.s32 %s165, 1
      %p169 = scmp.eq.s32.totalorder %s26, 1
      %p170 = scmp.ne.s32.totalorder %s165, %s167
      %p171 = scmp.eq.s32.totalorder %s26, 0
      %p172 = por %p170, %p171
      %p173 = scmp.ne.s32.totalorder %s165, %s167
      %p174 = scmp.eq.s32.totalorder %s31, 1
      %p175 = por %p173, %p174
      %p176 = scmp.ne.s32.totalorder %s167, %s168
      %p177 = scmp.eq.s32.totalorder %s31, 0
      %p178 = por %p176, %p177
      %p179 = scmp.ne.s32.totalorder %s167, %s168
      %p180 = scmp.eq.s32.totalorder %s32, 1
      %p181 = por %p179, %p180
      %p183 = scmp.ne.s32.totalorder %s168, %s182
      %p184 = scmp.eq.s32.totalorder %s32, 0
      %p185 = por %p183, %p184
      %s187 = sadd.s32 %s186, 1
      %p190 = scmp.eq.s32.totalorder %s26, 1
      %p191 = scmp.ne.s32.totalorder %s186, %s188
      %p192 = scmp.eq.s32.totalorder %s26, 0
      %p193 = por %p191, %p192
      %p194 = scmp.ne.s32.totalorder %s186, %s188
      %p195 = scmp.eq.s32.totalorder %s31, 1
      %p196 = por %p194, %p195
      %p197 = scmp.ne.s32.totalorder %s188, %s189
      %p198 = scmp.eq.s32.totalorder %s31, 0
      %p199 = por %p197, %p198
      %p200 = scmp.ne.s32.totalorder %s188, %s189
      %p201 = scmp.eq.s32.totalorder %s32, 1
      %p202 = por %p200, %p201
      %p204 = scmp.ne.s32.totalorder %s189, %s203
      %p205 = scmp.eq.s32.totalorder %s32, 0
      %p206 = por %p204, %p205
      %s208 = sadd.s32 %s207, 1
      %p211 = scmp.eq.s32.totalorder %s26, 1
      %p212 = scmp.ne.s32.totalorder %s207, %s209
      %p213 = scmp.eq.s32.totalorder %s26, 0
      %p214 = por %p212, %p213
      %p215 = scmp.ne.s32.totalorder %s207, %s209
      %p216 = scmp.eq.s32.totalorder %s31, 1
      %p217 = por %p215, %p216
      %p218 = scmp.ne.s32.totalorder %s209, %s210
      %p219 = scmp.eq.s32.totalorder %s31, 0
      %p220 = por %p218, %p219
      %p221 = scmp.ne.s32.totalorder %s209, %s210
      %p222 = scmp.eq.s32.totalorder %s32, 1
      %p223 = por %p221, %p222
      %p225 = scmp.ne.s32.totalorder %s210, %s224
      %p226 = scmp.eq.s32.totalorder %s32, 0
      %p227 = por %p225, %p226
      %s229 = sadd.s32 %s228, 1
      %p232 = scmp.eq.s32.totalorder %s26, 1
      %p233 = scmp.ne.s32.totalorder %s228, %s230
      %p234 = scmp.eq.s32.totalorder %s26, 0
      %p235 = por %p233, %p234
      %p236 = scmp.ne.s32.totalorder %s228, %s230
      %p237 = scmp.eq.s32.totalorder %s31, 1
      %p238 = por %p236, %p237
      %p239 = scmp.ne.s32.totalorder %s230, %s231
      %p240 = scmp.eq.s32.totalorder %s31, 0
      %p241 = por %p239, %p240
      %p242 = scmp.ne.s32.totalorder %s230, %s231
      %p243 = scmp.eq.s32.totalorder %s32, 1
      %p244 = por %p242, %p243
      %p246 = scmp.ne.s32.totalorder %s231, %s245
      %p247 = scmp.eq.s32.totalorder %s32, 0
      %p248 = por %p246, %p247
      %s250 = sadd.s32 %s249, 1
      %p253 = scmp.eq.s32.totalorder %s26, 1
      %p254 = scmp.ne.s32.totalorder %s249, %s251
      %p255 = scmp.eq.s32.totalorder %s26, 0
      %p256 = por %p254, %p255
      %p257 = scmp.ne.s32.totalorder %s249, %s251
      %p258 = scmp.eq.s32.totalorder %s31, 1
      %p259 = por %p257, %p258
      %p260 = scmp.ne.s32.totalorder %s251, %s252
      %p261 = scmp.eq.s32.totalorder %s31, 0
      %p262 = por %p260, %p261
      %p263 = scmp.ne.s32.totalorder %s251, %s252
      %p264 = scmp.eq.s32.totalorder %s32, 1
      %p265 = por %p263, %p264
      %p267 = scmp.ne.s32.totalorder %s252, %s266
      %p268 = scmp.eq.s32.totalorder %s32, 0
      %p269 = por %p267, %p268
      %s271 = sadd.s32 %s270, 1
      %p274 = scmp.eq.s32.totalorder %s26, 1
      %p275 = scmp.ne.s32.totalorder %s270, %s272
      %p276 = scmp.eq.s32.totalorder %s26, 0
      %p277 = por %p275, %p276
      %p278 = scmp.ne.s32.totalorder %s270, %s272
      %p279 = scmp.eq.s32.totalorder %s31, 1
      %p280 = por %p278, %p279
      %p281 = scmp.ne.s32.totalorder %s272, %s273
      %p282 = scmp.eq.s32.totalorder %s31, 0
      %p283 = por %p281, %p282
      %p284 = scmp.ne.s32.totalorder %s272, %s273
      %p285 = scmp.eq.s32.totalorder %s32, 1
      %p286 = por %p284, %p285
      %p288 = scmp.ne.s32.totalorder %s273, %s287
      %p289 = scmp.eq.s32.totalorder %s32, 0
      %p290 = por %p288, %p289
      %s291 = ssub.s32 %s26, %s33
      %p292 = scmp.eq.s32.totalorder %s291, 0
      %s294 = sadd.s32 %s293, 1
      %s295 = scalar_select %p292, %s293, %s294
      %p298 = pneg %p292
      %p299 = scmp.eq.s32.totalorder %s26, 1
      %p300 = por %p298, %p299
      %p301 = scmp.ne.s32.totalorder %s293, %s296
      %p302 = scmp.eq.s32.totalorder %s26, 0
      %p303 = por %p301, %p302
      %p304 = scmp.ne.s32.totalorder %s293, %s296
      %p305 = scmp.eq.s32.totalorder %s31, 1
      %p306 = por %p304, %p305
      %p307 = scmp.ne.s32.totalorder %s296, %s297
      %p308 = scmp.eq.s32.totalorder %s31, 0
      %p309 = por %p307, %p308
      %p310 = scmp.ne.s32.totalorder %s296, %s297
      %p311 = scmp.eq.s32.totalorder %s32, 1
      %p312 = por %p310, %p311
      %p314 = scmp.ne.s32.totalorder %s297, %s313
      %p315 = scmp.eq.s32.totalorder %s32, 0
      %p316 = por %p314, %p315
      %p317 = scmp.le.s32.totalorder 1, %s26
      %p318 = scmp.lt.s32.totalorder %s26, 3
      %p319 = pnand %p317, %p318
      %p320 = pneg %p319
      // Predicated region
      $region9: #{tpu_custom_call.1} parent=5 // pred_check
        _
      $region10: #{tpu_custom_call.1} parent=5 // pred_check_branch
        %322 = sbr.rel (%p319) target = $region12
      $region11: #{tpu_custom_call.1} parent=5 // pred_region
        %s323 = ssub.s32 %s26, 1
        // Predicated region
        $region13: #{tpu_custom_call.1} parent=11 // pred_check
          %p324 = pneg %p73
        $region14: #{tpu_custom_call.1} parent=11 // pred_check_branch
          %326 = sbr.rel (%p324) target = $region16
        $region15: #{tpu_custom_call.1} parent=11 // pred_region
          _
        $region16: #{tpu_custom_call.1} parent=11 // pred_fallthru
          _
        // Predicated region
        $region17: #{tpu_custom_call.1} parent=11 // pred_check
          %p327 = pneg %p94
        $region18: #{tpu_custom_call.1} parent=11 // pred_check_branch
          %329 = sbr.rel (%p327) target = $region20
        $region19: #{tpu_custom_call.1} parent=11 // pred_region
          _
        $region20: #{tpu_custom_call.1} parent=11 // pred_fallthru
          _
        // Predicated region
        $region21: #{tpu_custom_call.1} parent=11 // pred_check
          %p330 = pneg %p115
        $region22: #{tpu_custom_call.1} parent=11 // pred_check_branch
          %332 = sbr.rel (%p330) target = $region24
        $region23: #{tpu_custom_call.1} parent=11 // pred_region
          %s334 = ssub.s32 3072, 3072
          %335 = vsyncadd [#allocation7], %s334
          %s336 = sshll.u32 [#allocation6], 4
          %s337 = int_to_ptr.vmem [resolvable:$true] %s336
          %342 = dma.hbm_to_vmem [thread:$0]  %s3, 3072, %s337, [#allocation7], 192, 192, 12
        $region24: #{tpu_custom_call.1} parent=11 // pred_fallthru
          _
        // Predicated region
        $region25: #{tpu_custom_call.1} parent=11 // pred_check
          %p343 = pneg %p136
        $region26: #{tpu_custom_call.1} parent=11 // pred_check_branch
          %345 = sbr.rel (%p343) target = $region28
        $region27: #{tpu_custom_call.1} parent=11 // pred_region
          %s347 = ssub.s32 1024, 1024
          %348 = vsyncadd [#allocation7], %s347
          %s349 = sshll.u32 [#allocation8], 4
          %s350 = int_to_ptr.vmem [resolvable:$true] %s349
          %355 = dma.hbm_to_vmem [thread:$0]  %s4, 1024, %s350, [#allocation7], 64, 64, 4
        $region28: #{tpu_custom_call.1} parent=11 // pred_fallthru
          _
        // Predicated region
        $region29: #{tpu_custom_call.1} parent=11 // pred_check
          %p356 = pneg %p157
        $region30: #{tpu_custom_call.1} parent=11 // pred_check_branch
          %358 = sbr.rel (%p356) target = $region32
        $region31: #{tpu_custom_call.1} parent=11 // pred_region
          _
        $region32: #{tpu_custom_call.1} parent=11 // pred_fallthru
          _
        // Predicated region
        $region33: #{tpu_custom_call.1} parent=11 // pred_check
          %p359 = pneg %p178
        $region34: #{tpu_custom_call.1} parent=11 // pred_check_branch
          %361 = sbr.rel (%p359) target = $region36
        $region35: #{tpu_custom_call.1} parent=11 // pred_region
          _
        $region36: #{tpu_custom_call.1} parent=11 // pred_fallthru
          _
        // Predicated region
        $region37: #{tpu_custom_call.1} parent=11 // pred_check
          %p362 = pneg %p199
        $region38: #{tpu_custom_call.1} parent=11 // pred_check_branch
          %364 = sbr.rel (%p362) target = $region40
        $region39: #{tpu_custom_call.1} parent=11 // pred_region
          _
        $region40: #{tpu_custom_call.1} parent=11 // pred_fallthru
          _
        // Predicated region
        $region41: #{tpu_custom_call.1} parent=11 // pred_check
          %p365 = pneg %p220
        $region42: #{tpu_custom_call.1} parent=11 // pred_check_branch
          %367 = sbr.rel (%p365) target = $region44
        $region43: #{tpu_custom_call.1} parent=11 // pred_region
          %s369 = ssub.s32 4096, 4096
          %370 = vsyncadd [#allocation10], %s369
          %s371 = sshll.u32 [#allocation9], 4
          %s372 = int_to_ptr.vmem [resolvable:$true] %s371
          %377 = dma.hbm_to_vmem [thread:$0]  %s8, 4096, %s372, [#allocation10], 256, 256, 16
        $region44: #{tpu_custom_call.1} parent=11 // pred_fallthru
          _
        // Predicated region
        $region45: #{tpu_custom_call.1} parent=11 // pred_check
          %p378 = pneg %p241
        $region46: #{tpu_custom_call.1} parent=11 // pred_check_branch
          %380 = sbr.rel (%p378) target = $region48
        $region47: #{tpu_custom_call.1} parent=11 // pred_region
          _
        $region48: #{tpu_custom_call.1} parent=11 // pred_fallthru
          _
        // Predicated region
        $region49: #{tpu_custom_call.1} parent=11 // pred_check
          %p381 = pneg %p262
        $region50: #{tpu_custom_call.1} parent=11 // pred_check_branch
          %383 = sbr.rel (%p381) target = $region52
        $region51: #{tpu_custom_call.1} parent=11 // pred_region
          %s385 = ssub.s32 4096, 4096
          %386 = vsyncadd [#allocation10], %s385
          %s387 = sshll.u32 [#allocation11], 4
          %s388 = int_to_ptr.vmem [resolvable:$true] %s387
          %393 = dma.hbm_to_vmem [thread:$0]  %s10, 4096, %s388, [#allocation10], 64, 64, 4
        $region52: #{tpu_custom_call.1} parent=11 // pred_fallthru
          _
        // Predicated region
        $region53: #{tpu_custom_call.1} parent=11 // pred_check
          %p394 = pneg %p283
        $region54: #{tpu_custom_call.1} parent=11 // pred_check_branch
          %396 = sbr.rel (%p394) target = $region56
        $region55: #{tpu_custom_call.1} parent=11 // pred_region
          _
        $region56: #{tpu_custom_call.1} parent=11 // pred_fallthru
          _
      $region12: #{tpu_custom_call.1} parent=5 // pred_fallthru
        _
      %p397 = scmp.lt.s32.totalorder %s26, 2
      // Predicated region
      $region57: #{tpu_custom_call.1} parent=5 // pred_check
        %p398 = pneg %p397
      $region58: #{tpu_custom_call.1} parent=5 // pred_check_branch
        %400 = sbr.rel (%p398) target = $region60
      $region59: #{tpu_custom_call.1} parent=5 // pred_region
        // Predicated region
        $region61: #{tpu_custom_call.1} parent=59 // pred_check
          %p401 = pneg %p46
        $region62: #{tpu_custom_call.1} parent=59 // pred_check_branch
          %403 = sbr.rel (%p401) target = $region64
        $region63: #{tpu_custom_call.1} parent=59 // pred_region
          %s404 = sand.u32 %s36, 1
          %s405 = scalar_lea.sflag [#allocation4], %s404
          %s406 = sand.u32 %s36, 1
          %s407 = smul.addr %s406, 8
          %s408 = scalar_lea.vmem [#allocation3], %s407
          %s410 = ssub.s32 128, 128
          %411 = vsyncadd %s405, %s410
          %s412 = smul.addr %s26, 128
          %s413 = scalar_lea.hbm %s0, %s412
          %s415 = sshll.u32 %s408, 4
          %s416 = int_to_ptr.vmem [resolvable:$true] %s415
          %418 = dma.hbm_to_vmem [thread:$0]  %s413, 128, %s416, %s405
        $region64: #{tpu_custom_call.1} parent=59 // pred_fallthru
          _
      $region60: #{tpu_custom_call.1} parent=5 // pred_fallthru
        _
      %p419 = scmp.le.s32.totalorder 1, %s26
      %p420 = scmp.lt.s32.totalorder %s26, 3
      %p421 = pnand %p419, %p420
      %p422 = pneg %p421
      // Predicated region
      $region65: #{tpu_custom_call.1} parent=5 // pred_check
        _
      $region66: #{tpu_custom_call.1} parent=5 // pred_check_branch
        %424 = sbr.rel (%p421) target = $region68
      $region67: #{tpu_custom_call.1} parent=5 // pred_region
        %s425 = ssub.s32 %s26, 1
        %s426 = sand.u32 %s39, 1
        %s427 = scalar_lea.sflag [#allocation4], %s426
        %s428 = sand.u32 %s39, 1
        %s429 = smul.addr %s428, 8
        %s430 = scalar_lea.vmem [#allocation3], %s429
        // Predicated region
        $region69: #{tpu_custom_call.1} parent=67 // pred_check
          %p431 = pneg %p52
        $region70: #{tpu_custom_call.1} parent=67 // pred_check_branch
          %433 = sbr.rel (%p431) target = $region72
        $region71: #{tpu_custom_call.1} parent=67 // pred_region
          %434 = dma.done %s427, 128
        $region72: #{tpu_custom_call.1} parent=67 // pred_fallthru
          _
        // Predicated region
        $region73: #{tpu_custom_call.1} parent=67 // pred_check
          %p435 = pneg %p115
        $region74: #{tpu_custom_call.1} parent=67 // pred_check_branch
          %437 = sbr.rel (%p435) target = $region76
        $region75: #{tpu_custom_call.1} parent=67 // pred_region
          %438 = dma.done [#allocation7], 3072
        $region76: #{tpu_custom_call.1} parent=67 // pred_fallthru
          _
        // Predicated region
        $region77: #{tpu_custom_call.1} parent=67 // pred_check
          %p439 = pneg %p136
        $region78: #{tpu_custom_call.1} parent=67 // pred_check_branch
          %441 = sbr.rel (%p439) target = $region80
        $region79: #{tpu_custom_call.1} parent=67 // pred_region
          %442 = dma.done [#allocation7], 1024
        $region80: #{tpu_custom_call.1} parent=67 // pred_fallthru
          _
        // Predicated region
        $region81: #{tpu_custom_call.1} parent=67 // pred_check
          %p443 = pneg %p220
        $region82: #{tpu_custom_call.1} parent=67 // pred_check_branch
          %445 = sbr.rel (%p443) target = $region84
        $region83: #{tpu_custom_call.1} parent=67 // pred_region
          %446 = dma.done [#allocation10], 4096
        $region84: #{tpu_custom_call.1} parent=67 // pred_fallthru
          _
        // Predicated region
        $region85: #{tpu_custom_call.1} parent=67 // pred_check
          %p447 = pneg %p262
        $region86: #{tpu_custom_call.1} parent=67 // pred_check_branch
          %449 = sbr.rel (%p447) target = $region88
        $region87: #{tpu_custom_call.1} parent=67 // pred_region
          %450 = dma.done [#allocation10], 4096
        $region88: #{tpu_custom_call.1} parent=67 // pred_fallthru
          _
        %s451 = sand.u32 %s39, 1
        %s452 = scalar_lea.sflag [#allocation4], %s451
        %s453 = sand.u32 %s39, 1
        %s454 = smul.addr %s453, 8
        %s455 = scalar_lea.vmem [#allocation3], %s454
        %p456 = pneg %p52
        %p457 = pneg %p49
        %p458 = pneg %p73
        %p459 = pneg %p70
        %p460 = pneg %p94
        %p461 = pneg %p91
        %p462 = pneg %p115
        %p463 = pneg %p112
        %p464 = pneg %p136
        %p465 = pneg %p133
        %p466 = pneg %p157
        %p467 = pneg %p154
        %p468 = pneg %p178
        %p469 = pneg %p175
        %p470 = pneg %p199
        %p471 = pneg %p196
        %p472 = pneg %p220
        %p473 = pneg %p217
        %p474 = pneg %p241
        %p475 = pneg %p238
        %p476 = pneg %p262
        %p477 = pneg %p259
        %p478 = pneg %p283
        %p479 = pneg %p280
        %p480 = pneg %p309
        %p481 = pneg %p306
        %s482 = sand.u32 %s296, 1
        %s483 = scalar_lea.sflag [#allocation5], %s482
        %s484 = sand.u32 %s296, 1
        %s485 = smul.addr %s484, 8
        %s486 = scalar_lea.vmem [#allocation12], %s485
        %v488 = vld [vmem:[%s430] sm:$0xff]
        %v489 = vld [vmem:[%s1] sm:$0x1]
        %v490 = vld [vmem:[%s2] sm:$0x1]
        %491 = vadd.xlane.f32.xlu0 %v488
        %v492 = vpop.xlane.xlu0 %491
        %v493 = vrcp.pop 128.0
        %v494 = vmul.f32 %v492, %v493
        %v495 = vsub.f32 %v488, %v494
        %v496 = vmul.f32 %v495, %v495
        %497 = vadd.xlane.f32.xlu0 %v496
        %v498 = vpop.xlane.xlu0 %497
        %v499 = vmul.f32 %v498, %v493
        %v500 = vadd.f32 %v499, 1e-05
        %v501 = vrsqrt.pop %v500
        %v502 = vmul.f32 %v495, %v501
        %v504 = vlaneseq
        %v505 = vshrl.u32 %v504, 7
        %v506 = vsub.s32 0, %v505
        %v507 = vrot.slane %v489, %v506
        %v509 = vmul.f32 %v502, %v507
        %v511 = vlaneseq
        %v512 = vshrl.u32 %v511, 7
        %v513 = vsub.s32 0, %v512
        %v514 = vrot.slane %v490, %v513
        %v516 = vadd.f32 %v509, %v514
        %v517 = vpack.c.bf16 %v516, %v516
        %v518 = vld [vmem:[#allocation6] sm:$0xff]
        %v519 = vld [vmem:[#allocation6 + $0x8] sm:$0xf]
        %v520 = vld [vmem:[#allocation6 + $0xc] sm:$0xff]
        %v521 = vld [vmem:[#allocation6 + $0x14] sm:$0xf]
        %v522 = vld [vmem:[#allocation6 + $0x18] sm:$0xff]
        %v523 = vld [vmem:[#allocation6 + $0x20] sm:$0xf]
        %v524 = vld [vmem:[#allocation6 + $0x24] sm:$0xff]
        %v525 = vld [vmem:[#allocation6 + $0x2c] sm:$0xf]
        %v526 = vld [vmem:[#allocation6 + $0x30] sm:$0xff]
        %v527 = vld [vmem:[#allocation6 + $0x38] sm:$0xf]
        %v528 = vld [vmem:[#allocation6 + $0x3c] sm:$0xff]
        %v529 = vld [vmem:[#allocation6 + $0x44] sm:$0xf]
        %v530 = vld [vmem:[#allocation6 + $0x48] sm:$0xff]
        %v531 = vld [vmem:[#allocation6 + $0x50] sm:$0xf]
        %v532 = vld [vmem:[#allocation6 + $0x54] sm:$0xff]
        %v533 = vld [vmem:[#allocation6 + $0x5c] sm:$0xf]
        %v534 = vld [vmem:[#allocation6 + $0x60] sm:$0xff]
        %v535 = vld [vmem:[#allocation6 + $0x68] sm:$0xf]
        %v536 = vld [vmem:[#allocation6 + $0x6c] sm:$0xff]
        %v537 = vld [vmem:[#allocation6 + $0x74] sm:$0xf]
        %v538 = vld [vmem:[#allocation6 + $0x78] sm:$0xff]
        %v539 = vld [vmem:[#allocation6 + $0x80] sm:$0xf]
        %v540 = vld [vmem:[#allocation6 + $0x84] sm:$0xff]
        %v541 = vld [vmem:[#allocation6 + $0x8c] sm:$0xf]
        %v542 = vld [vmem:[#allocation6 + $0x90] sm:$0xff]
        %v543 = vld [vmem:[#allocation6 + $0x98] sm:$0xf]
        %v544 = vld [vmem:[#allocation6 + $0x9c] sm:$0xff]
        %v545 = vld [vmem:[#allocation6 + $0xa4] sm:$0xf]
        %v546 = vld [vmem:[#allocation6 + $0xa8] sm:$0xff]
        %v547 = vld [vmem:[#allocation6 + $0xb0] sm:$0xf]
        %v548 = vld [vmem:[#allocation6 + $0xb4] sm:$0xff]
        %v549 = vld [vmem:[#allocation6 + $0xbc] sm:$0xf]
        %v582 = vunpack.c.l.b16 %v518
        %v583 = vunpack.c.h.b16 %v518
        %v584 = vunpack.c.l.b16 %v519
        %v585 = vunpack.c.l.b16 %v520
        %v586 = vunpack.c.h.b16 %v520
        %v587 = vunpack.c.l.b16 %v521
        %v588 = vunpack.c.l.b16 %v522
        %v589 = vunpack.c.h.b16 %v522
        %v590 = vunpack.c.l.b16 %v523
        %v591 = vunpack.c.l.b16 %v524
        %v592 = vunpack.c.h.b16 %v524
        %v593 = vunpack.c.l.b16 %v525
        %v594 = vunpack.c.l.b16 %v526
        %v595 = vunpack.c.h.b16 %v526
        %v596 = vunpack.c.l.b16 %v527
        %v597 = vunpack.c.l.b16 %v528
        %v598 = vunpack.c.h.b16 %v528
        %v599 = vunpack.c.l.b16 %v529
        %v600 = vunpack.c.l.b16 %v530
        %v601 = vunpack.c.h.b16 %v530
        %v602 = vunpack.c.l.b16 %v531
        %v603 = vunpack.c.l.b16 %v532
        %v604 = vunpack.c.h.b16 %v532
        %v605 = vunpack.c.l.b16 %v533
        %v606 = vunpack.c.l.b16 %v534
        %v607 = vunpack.c.h.b16 %v534
        %v608 = vunpack.c.l.b16 %v535
        %v609 = vunpack.c.l.b16 %v536
        %v610 = vunpack.c.h.b16 %v536
        %v611 = vunpack.c.l.b16 %v537
        %v612 = vunpack.c.l.b16 %v538
        %v613 = vunpack.c.h.b16 %v538
        %v614 = vunpack.c.l.b16 %v539
        %v615 = vunpack.c.l.b16 %v540
        %v616 = vunpack.c.h.b16 %v540
        %v617 = vunpack.c.l.b16 %v541
        %v618 = vunpack.c.l.b16 %v542
        %v619 = vunpack.c.h.b16 %v542
        %v620 = vunpack.c.l.b16 %v543
        %v621 = vunpack.c.l.b16 %v544
        %v622 = vunpack.c.h.b16 %v544
        %v623 = vunpack.c.l.b16 %v545
        %v624 = vunpack.c.l.b16 %v546
        %v625 = vunpack.c.h.b16 %v546
        %v626 = vunpack.c.l.b16 %v547
        %v627 = vunpack.c.l.b16 %v548
        %v628 = vunpack.c.h.b16 %v548
        %v629 = vunpack.c.l.b16 %v549
        %v630 = vpack.c.b16 %v585, %v582
        %v631 = vpack.c.b16 %v586, %v583
        %v632 = vpack.c.b16 %v587, %v584
        %v633 = vpack.c.b16 %v591, %v588
        %v634 = vpack.c.b16 %v592, %v589
        %v635 = vpack.c.b16 %v593, %v590
        %v636 = vpack.c.b16 %v597, %v594
        %v637 = vpack.c.b16 %v598, %v595
        %v638 = vpack.c.b16 %v599, %v596
        %v639 = vpack.c.b16 %v603, %v600
        %v640 = vpack.c.b16 %v604, %v601
        %v641 = vpack.c.b16 %v605, %v602
        %v642 = vpack.c.b16 %v609, %v606
        %v643 = vpack.c.b16 %v610, %v607
        %v644 = vpack.c.b16 %v611, %v608
        %v645 = vpack.c.b16 %v615, %v612
        %v646 = vpack.c.b16 %v616, %v613
        %v647 = vpack.c.b16 %v617, %v614
        %v648 = vpack.c.b16 %v621, %v618
        %v649 = vpack.c.b16 %v622, %v619
        %v650 = vpack.c.b16 %v623, %v620
        %v651 = vpack.c.b16 %v627, %v624
        %v652 = vpack.c.b16 %v628, %v625
        %v653 = vpack.c.b16 %v629, %v626
        %678 = vmatprep.subr.bf16.mxu0 %v631
        %679 = vmatpush1.bf16.msra.mxu0 %v630
        %680 = vmatprep.subr.bf16.mxu0 %v634
        %681 = vmatpush1.bf16.msra.mxu0 %v633
        %682 = vmatprep.subr.bf16.mxu0 %v637
        %683 = vmatpush1.bf16.msra.mxu0 %v636
        %684 = vmatprep.subr.bf16.mxu0 %v640
        %685 = vmatpush1.bf16.msra.mxu0 %v639
        %686 = vmatprep.subr.bf16.mxu0 %v643
        %687 = vmatpush1.bf16.msra.mxu0 %v642
        %688 = vmatprep.subr.bf16.mxu0 %v646
        %689 = vmatpush1.bf16.msra.mxu0 %v645
        %690 = vmatprep.subr.bf16.mxu0 %v649
        %691 = vmatpush1.bf16.msra.mxu0 %v648
        %692 = vmatprep.subr.bf16.mxu0 %v652
        %693 = vmatpush1.bf16.msra.mxu0 %v651
        %694 = vmatprep.subr.bf16.mxu0 0
        %695 = vmatpush1.bf16.msra.mxu0 0
        %696 = vmatprep.subr.bf16.mxu0 0
        %697 = vmatpush1.bf16.msra.mxu0 0
        %698 = vmatprep.subr.bf16.mxu0 0
        %699 = vmatpush1.bf16.msra.mxu0 0
        %700 = vmatprep.subr.bf16.mxu0 0
        %701 = vmatpush1.bf16.msra.mxu0 0
        %702 = vmatprep.subr.bf16.mxu0 0
        %703 = vmatpush1.bf16.msra.mxu0 0
        %704 = vmatprep.subr.bf16.mxu0 0
        %705 = vmatpush1.bf16.msra.mxu0 0
        %706 = vmatprep.subr.bf16.mxu0 0
        %707 = vmatpush1.bf16.msra.mxu0 0
        %708 = vmatprep.subr.bf16.mxu0 0
        %709 = vmatpush1.bf16.msra.mxu0 0
        %710 = vmatprep.mubr.bf16.mxu0 0
        %711 = vmatmul.mubr.bf16.gmra.mrb[0].mxu0 %v517
        %v712 = vpop.f32.mrb[0].mxu0
        %v713 = vadd.f32 0.0, %v712
        %v714 = vpop.f32.mrb[0].mxu0
        %v715 = vadd.f32 0.0, %v714
        %v716 = vpop.f32.mrb[0].mxu0
        %v717 = vpop.f32.mrb[0].mxu0
        %718 = vdwg.mxu0
        %719 = vmatprep.subr.bf16.mxu0 0
        %720 = vmatpush1.bf16.msra.mxu0 %v632
        %721 = vmatprep.subr.bf16.mxu0 0
        %722 = vmatpush1.bf16.msra.mxu0 %v635
        %723 = vmatprep.subr.bf16.mxu0 0
        %724 = vmatpush1.bf16.msra.mxu0 %v638
        %725 = vmatprep.subr.bf16.mxu0 0
        %726 = vmatpush1.bf16.msra.mxu0 %v641
        %727 = vmatprep.subr.bf16.mxu0 0
        %728 = vmatpush1.bf16.msra.mxu0 %v644
        %729 = vmatprep.subr.bf16.mxu0 0
        %730 = vmatpush1.bf16.msra.mxu0 %v647
        %731 = vmatprep.subr.bf16.mxu0 0
        %732 = vmatpush1.bf16.msra.mxu0 %v650
        %733 = vmatprep.subr.bf16.mxu0 0
        %734 = vmatpush1.bf16.msra.mxu0 %v653
        %735 = vmatprep.subr.bf16.mxu0 0
        %736 = vmatpush1.bf16.msra.mxu0 0
        %737 = vmatprep.subr.bf16.mxu0 0
        %738 = vmatpush1.bf16.msra.mxu0 0
        %739 = vmatprep.subr.bf16.mxu0 0
        %740 = vmatpush1.bf16.msra.mxu0 0
        %741 = vmatprep.subr.bf16.mxu0 0
        %742 = vmatpush1.bf16.msra.mxu0 0
        %743 = vmatprep.subr.bf16.mxu0 0
        %744 = vmatpush1.bf16.msra.mxu0 0
        %745 = vmatprep.subr.bf16.mxu0 0
        %746 = vmatpush1.bf16.msra.mxu0 0
        %747 = vmatprep.subr.bf16.mxu0 0
        %748 = vmatpush1.bf16.msra.mxu0 0
        %749 = vmatprep.subr.bf16.mxu0 0
        %750 = vmatpush1.bf16.msra.mxu0 0
        %751 = vmatprep.mubr.bf16.mxu0 0
        %752 = vmatmul.mubr.bf16.gmra.mrb[0].mxu0 %v517
        %v753 = vpop.f32.mrb[0].mxu0
        %v754 = vadd.f32 0.0, %v753
        %v755 = vpop.f32.mrb[0].mxu0
        %v756 = vpop.f32.mrb[0].mxu0
        %v757 = vpop.f32.mrb[0].mxu0
        %758 = vdwg.mxu0
        %v759 = vlaneseq
        %v760 = vshrl.u32 %v759, 7
        %v761 = vlaneseq
        %v762 = vand.u32 %v761, 127
        %vm763 = vcmp.le.s32.totalorder %v762, %v760
        %v764 = vpack.c.bf16 %v713, %v713
        %v765 = vpack.c.bf16 %v715, %v715
        %v766 = vpack.c.bf16 %v754, %v754
        %vm767 = vcmask 261120
        %v769 = vsel %vm767, %v764, 0
        %v772 = vsel %vm767, %v765, 0
        %774 = vmatprep.subr.bf16.mxu0 0
        %775 = vmatpush1.bf16.xpose.msra.mxu0 %v772
        %776 = vmatprep.subr.bf16.mxu0 0
        %777 = vmatpush1.bf16.xpose.msra.mxu0 0
        %778 = vmatprep.subr.bf16.mxu0 0
        %779 = vmatpush1.bf16.xpose.msra.mxu0 0
        %780 = vmatprep.subr.bf16.mxu0 0
        %781 = vmatpush1.bf16.xpose.msra.mxu0 0
        %782 = vmatprep.subr.bf16.mxu0 0
        %783 = vmatpush1.bf16.xpose.msra.mxu0 0
        %784 = vmatprep.subr.bf16.mxu0 0
        %785 = vmatpush1.bf16.xpose.msra.mxu0 0
        %786 = vmatprep.subr.bf16.mxu0 0
        %787 = vmatpush1.bf16.xpose.msra.mxu0 0
        %788 = vmatprep.subr.bf16.mxu0 0
        %789 = vmatpush1.bf16.xpose.msra.mxu0 0
        %790 = vmatprep.subr.bf16.mxu0 0
        %791 = vmatpush1.bf16.xpose.msra.mxu0 0
        %792 = vmatprep.subr.bf16.mxu0 0
        %793 = vmatpush1.bf16.xpose.msra.mxu0 0
        %794 = vmatprep.subr.bf16.mxu0 0
        %795 = vmatpush1.bf16.xpose.msra.mxu0 0
        %796 = vmatprep.subr.bf16.mxu0 0
        %797 = vmatpush1.bf16.xpose.msra.mxu0 0
        %798 = vmatprep.subr.bf16.mxu0 0
        %799 = vmatpush1.bf16.xpose.msra.mxu0 0
        %800 = vmatprep.subr.bf16.mxu0 0
        %801 = vmatpush1.bf16.xpose.msra.mxu0 0
        %802 = vmatprep.subr.bf16.mxu0 0
        %803 = vmatpush1.bf16.xpose.msra.mxu0 0
        %804 = vmatprep.subr.bf16.mxu0 0
        %805 = vmatpush1.bf16.xpose.msra.mxu0 0
        %806 = vmatprep.mubr.bf16.mxu0 0
        %807 = vmatmul.mubr.bf16.gmra.mrb[0].mxu0 %v769
        %v808 = vpop.f32.mrb[0].mxu0
        %v809 = vadd.f32 0.0, %v808
        %v810 = vpop.f32.mrb[0].mxu0
        %v811 = vpop.f32.mrb[0].mxu0
        %v812 = vpop.f32.mrb[0].mxu0
        %813 = vdwg.mxu0
        %v814 = vmul.f32 %v809, 0.17677669
        %v815 = vsel %vm763, %v814, -1e+30
        %vm816 = vcmask 64512
        %v817 = vsel %vm816, %v815, -inf
        %818 = vmax.xlane.f32.xlu0 %v817
        %v819 = vpop.xlane.xlu0 %818
        %v820 = vsub.f32 %v815, %v819
        %v821 = vmul.f32 %v820, 1.442695
        %v822 = vpow.pop %v821
        %v823 = vsel %vm816, %v822, 0.0
        %824 = vadd.xlane.f32.xlu0 %v823
        %v825 = vpop.xlane.xlu0 %824
        %v826 = vrcp.pop %v825
        %v827 = vmul.f32 %v822, %v826
        %v828 = vpack.c.bf16 %v827, %v827
        %v830 = vsel %vm816, %v828, 0
        %vm832 = vcmask 1043456
        %v834 = vsel %vm832, %v766, 0
        %836 = vmatprep.subr.bf16.mxu0 0
        %837 = vmatpush1.bf16.msra.mxu0 %v834
        %838 = vmatprep.subr.bf16.mxu0 0
        %839 = vmatpush1.bf16.msra.mxu0 0
        %840 = vmatprep.subr.bf16.mxu0 0
        %841 = vmatpush1.bf16.msra.mxu0 0
        %842 = vmatprep.subr.bf16.mxu0 0
        %843 = vmatpush1.bf16.msra.mxu0 0
        %844 = vmatprep.subr.bf16.mxu0 0
        %845 = vmatpush1.bf16.msra.mxu0 0
        %846 = vmatprep.subr.bf16.mxu0 0
        %847 = vmatpush1.bf16.msra.mxu0 0
        %848 = vmatprep.subr.bf16.mxu0 0
        %849 = vmatpush1.bf16.msra.mxu0 0
        %850 = vmatprep.subr.bf16.mxu0 0
        %851 = vmatpush1.bf16.msra.mxu0 0
        %852 = vmatprep.subr.bf16.mxu0 0
        %853 = vmatpush1.bf16.msra.mxu0 0
        %854 = vmatprep.subr.bf16.mxu0 0
        %855 = vmatpush1.bf16.msra.mxu0 0
        %856 = vmatprep.subr.bf16.mxu0 0
        %857 = vmatpush1.bf16.msra.mxu0 0
        %858 = vmatprep.subr.bf16.mxu0 0
        %859 = vmatpush1.bf16.msra.mxu0 0
        %860 = vmatprep.subr.bf16.mxu0 0
        %861 = vmatpush1.bf16.msra.mxu0 0
        %862 = vmatprep.subr.bf16.mxu0 0
        %863 = vmatpush1.bf16.msra.mxu0 0
        %864 = vmatprep.subr.bf16.mxu0 0
        %865 = vmatpush1.bf16.msra.mxu0 0
        %866 = vmatprep.subr.bf16.mxu0 0
        %867 = vmatpush1.bf16.msra.mxu0 0
        %868 = vmatprep.mubr.bf16.mxu0 0
        %869 = vmatmul.mubr.bf16.gmra.mrb[0].mxu0 %v830
        %v870 = vpop.f32.mrb[0].mxu0
        %v871 = vadd.f32 0.0, %v870
        %v872 = vpop.f32.mrb[0].mxu0
        %v873 = vpop.f32.mrb[0].mxu0
        %v874 = vpop.f32.mrb[0].mxu0
        %875 = vdwg.mxu0
        %876 = vst.msk [vmem:[#allocation2] sm:$0xff] %vm767, %v871
        %878 = vrot.lane.b32.xlu0 %v764, 96
        %v879 = vpop.permute.xlu0 %878
        %881 = vrot.lane.b32.xlu0 %v765, 96
        %v882 = vpop.permute.xlu0 %881
        %v884 = vsel %vm767, %v879, 0
        %v887 = vsel %vm767, %v882, 0
        %889 = vmatprep.subr.bf16.mxu0 0
        %890 = vmatpush1.bf16.xpose.msra.mxu0 %v887
        %891 = vmatprep.subr.bf16.mxu0 0
        %892 = vmatpush1.bf16.xpose.msra.mxu0 0
        %893 = vmatprep.subr.bf16.mxu0 0
        %894 = vmatpush1.bf16.xpose.msra.mxu0 0
        %895 = vmatprep.subr.bf16.mxu0 0
        %896 = vmatpush1.bf16.xpose.msra.mxu0 0
        %897 = vmatprep.subr.bf16.mxu0 0
        %898 = vmatpush1.bf16.xpose.msra.mxu0 0
        %899 = vmatprep.subr.bf16.mxu0 0
        %900 = vmatpush1.bf16.xpose.msra.mxu0 0
        %901 = vmatprep.subr.bf16.mxu0 0
        %902 = vmatpush1.bf16.xpose.msra.mxu0 0
        %903 = vmatprep.subr.bf16.mxu0 0
        %904 = vmatpush1.bf16.xpose.msra.mxu0 0
        %905 = vmatprep.subr.bf16.mxu0 0
        %906 = vmatpush1.bf16.xpose.msra.mxu0 0
        %907 = vmatprep.subr.bf16.mxu0 0
        %908 = vmatpush1.bf16.xpose.msra.mxu0 0
        %909 = vmatprep.subr.bf16.mxu0 0
        %910 = vmatpush1.bf16.xpose.msra.mxu0 0
        %911 = vmatprep.subr.bf16.mxu0 0
        %912 = vmatpush1.bf16.xpose.msra.mxu0 0
        %913 = vmatprep.subr.bf16.mxu0 0
        %914 = vmatpush1.bf16.xpose.msra.mxu0 0
        %915 = vmatprep.subr.bf16.mxu0 0
        %916 = vmatpush1.bf16.xpose.msra.mxu0 0
        %917 = vmatprep.subr.bf16.mxu0 0
        %918 = vmatpush1.bf16.xpose.msra.mxu0 0
        %919 = vmatprep.subr.bf16.mxu0 0
        %920 = vmatpush1.bf16.xpose.msra.mxu0 0
        %921 = vmatprep.mubr.bf16.mxu0 0
        %922 = vmatmul.mubr.bf16.gmra.mrb[0].mxu0 %v884
        %v923 = vpop.f32.mrb[0].mxu0
        %v924 = vadd.f32 0.0, %v923
        %v925 = vpop.f32.mrb[0].mxu0
        %v926 = vpop.f32.mrb[0].mxu0
        %v927 = vpop.f32.mrb[0].mxu0
        %928 = vdwg.mxu0
        %v929 = vmul.f32 %v924, 0.17677669
        %v930 = vsel %vm763, %v929, -1e+30
        %v931 = vsel %vm816, %v930, -inf
        %932 = vmax.xlane.f32.xlu0 %v931
        %v933 = vpop.xlane.xlu0 %932
        %v934 = vsub.f32 %v930, %v933
        %v935 = vmul.f32 %v934, 1.442695
        %v936 = vpow.pop %v935
        %v937 = vsel %vm816, %v936, 0.0
        %938 = vadd.xlane.f32.xlu0 %v937
        %v939 = vpop.xlane.xlu0 %938
        %v940 = vrcp.pop %v939
        %v941 = vmul.f32 %v936, %v940
        %v942 = vpack.c.bf16 %v941, %v941
        %944 = vrot.lane.b32.xlu0 %v766, 96
        %v945 = vpop.permute.xlu0 %944
        %v947 = vsel %vm816, %v942, 0
        %v950 = vsel %vm832, %v945, 0
        %952 = vmatprep.subr.bf16.mxu0 0
        %953 = vmatpush1.bf16.msra.mxu0 %v950
        %954 = vmatprep.subr.bf16.mxu0 0
        %955 = vmatpush1.bf16.msra.mxu0 0
        %956 = vmatprep.subr.bf16.mxu0 0
        %957 = vmatpush1.bf16.msra.mxu0 0
        %958 = vmatprep.subr.bf16.mxu0 0
        %959 = vmatpush1.bf16.msra.mxu0 0
        %960 = vmatprep.subr.bf16.mxu0 0
        %961 = vmatpush1.bf16.msra.mxu0 0
        %962 = vmatprep.subr.bf16.mxu0 0
        %963 = vmatpush1.bf16.msra.mxu0 0
        %964 = vmatprep.subr.bf16.mxu0 0
        %965 = vmatpush1.bf16.msra.mxu0 0
        %966 = vmatprep.subr.bf16.mxu0 0
        %967 = vmatpush1.bf16.msra.mxu0 0
        %968 = vmatprep.subr.bf16.mxu0 0
        %969 = vmatpush1.bf16.msra.mxu0 0
        %970 = vmatprep.subr.bf16.mxu0 0
        %971 = vmatpush1.bf16.msra.mxu0 0
        %972 = vmatprep.subr.bf16.mxu0 0
        %973 = vmatpush1.bf16.msra.mxu0 0
        %974 = vmatprep.subr.bf16.mxu0 0
        %975 = vmatpush1.bf16.msra.mxu0 0
        %976 = vmatprep.subr.bf16.mxu0 0
        %977 = vmatpush1.bf16.msra.mxu0 0
        %978 = vmatprep.subr.bf16.mxu0 0
        %979 = vmatpush1.bf16.msra.mxu0 0
        %980 = vmatprep.subr.bf16.mxu0 0
        %981 = vmatpush1.bf16.msra.mxu0 0
        %982 = vmatprep.subr.bf16.mxu0 0
        %983 = vmatpush1.bf16.msra.mxu0 0
        %984 = vmatprep.mubr.bf16.mxu0 0
        %985 = vmatmul.mubr.bf16.gmra.mrb[0].mxu0 %v947
        %v986 = vpop.f32.mrb[0].mxu0
        %v987 = vadd.f32 0.0, %v986
        %v988 = vpop.f32.mrb[0].mxu0
        %v989 = vpop.f32.mrb[0].mxu0
        %v990 = vpop.f32.mrb[0].mxu0
        %991 = vdwg.mxu0
        %993 = vrot.lane.b32.xlu0 %v987, 32
        %v994 = vpop.permute.xlu0 %993
        %vm996 = vcmask 523520
        %997 = vst.msk [vmem:[#allocation2] sm:$0xff] %vm996, %v994
        %998 = vrot.lane.b32.xlu0 %v764, 64
        %v999 = vpop.permute.xlu0 %998
        %1000 = vrot.lane.b32.xlu0 %v765, 64
        %v1001 = vpop.permute.xlu0 %1000
        %v1003 = vsel %vm767, %v999, 0
        %v1006 = vsel %vm767, %v1001, 0
        %1008 = vmatprep.subr.bf16.mxu0 0
        %1009 = vmatpush1.bf16.xpose.msra.mxu0 %v1006
        %1010 = vmatprep.subr.bf16.mxu0 0
        %1011 = vmatpush1.bf16.xpose.msra.mxu0 0
        %1012 = vmatprep.subr.bf16.mxu0 0
        %1013 = vmatpush1.bf16.xpose.msra.mxu0 0
        %1014 = vmatprep.subr.bf16.mxu0 0
        %1015 = vmatpush1.bf16.xpose.msra.mxu0 0
        %1016 = vmatprep.subr.bf16.mxu0 0
        %1017 = vmatpush1.bf16.xpose.msra.mxu0 0
        %1018 = vmatprep.subr.bf16.mxu0 0
        %1019 = vmatpush1.bf16.xpose.msra.mxu0 0
        %1020 = vmatprep.subr.bf16.mxu0 0
        %1021 = vmatpush1.bf16.xpose.msra.mxu0 0
        %1022 = vmatprep.subr.bf16.mxu0 0
        %1023 = vmatpush1.bf16.xpose.msra.mxu0 0
        %1024 = vmatprep.subr.bf16.mxu0 0
        %1025 = vmatpush1.bf16.xpose.msra.mxu0 0
        %1026 = vmatprep.subr.bf16.mxu0 0
        %1027 = vmatpush1.bf16.xpose.msra.mxu0 0
        %1028 = vmatprep.subr.bf16.mxu0 0
        %1029 = vmatpush1.bf16.xpose.msra.mxu0 0
        %1030 = vmatprep.subr.bf16.mxu0 0
        %1031 = vmatpush1.bf16.xpose.msra.mxu0 0
        %1032 = vmatprep.subr.bf16.mxu0 0
        %1033 = vmatpush1.bf16.xpose.msra.mxu0 0
        %1034 = vmatprep.subr.bf16.mxu0 0
        %1035 = vmatpush1.bf16.xpose.msra.mxu0 0
        %1036 = vmatprep.subr.bf16.mxu0 0
        %1037 = vmatpush1.bf16.xpose.msra.mxu0 0
        %1038 = vmatprep.subr.bf16.mxu0 0
        %1039 = vmatpush1.bf16.xpose.msra.mxu0 0
        %1040 = vmatprep.mubr.bf16.mxu0 0
        %1041 = vmatmul.mubr.bf16.gmra.mrb[0].mxu0 %v1003
        %v1042 = vpop.f32.mrb[0].mxu0
        %v1043 = vadd.f32 0.0, %v1042
        %v1044 = vpop.f32.mrb[0].mxu0
        %v1045 = vpop.f32.mrb[0].mxu0
        %v1046 = vpop.f32.mrb[0].mxu0
        %1047 = vdwg.mxu0
        %v1048 = vmul.f32 %v1043, 0.17677669
        %v1049 = vsel %vm763, %v1048, -1e+30
        %v1050 = vsel %vm816, %v1049, -inf
        %1051 = vmax.xlane.f32.xlu0 %v1050
        %v1052 = vpop.xlane.xlu0 %1051
        %v1053 = vsub.f32 %v1049, %v1052
        %v1054 = vmul.f32 %v1053, 1.442695
        %v1055 = vpow.pop %v1054
        %v1056 = vsel %vm816, %v1055, 0.0
        %1057 = vadd.xlane.f32.xlu0 %v1056
        %v1058 = vpop.xlane.xlu0 %1057
        %v1059 = vrcp.pop %v1058
        %v1060 = vmul.f32 %v1055, %v1059
        %v1061 = vpack.c.bf16 %v1060, %v1060
        %1062 = vrot.lane.b32.xlu0 %v766, 64
        %v1063 = vpop.permute.xlu0 %1062
        %v1065 = vsel %vm816, %v1061, 0
        %v1068 = vsel %vm832, %v1063, 0
        %1070 = vmatprep.subr.bf16.mxu0 0
        %1071 = vmatpush1.bf16.msra.mxu0 %v1068
        %1072 = vmatprep.subr.bf16.mxu0 0
        %1073 = vmatpush1.bf16.msra.mxu0 0
        %1074 = vmatprep.subr.bf16.mxu0 0
        %1075 = vmatpush1.bf16.msra.mxu0 0
        %1076 = vmatprep.subr.bf16.mxu0 0
        %1077 = vmatpush1.bf16.msra.mxu0 0
        %1078 = vmatprep.subr.bf16.mxu0 0
        %1079 = vmatpush1.bf16.msra.mxu0 0
        %1080 = vmatprep.subr.bf16.mxu0 0
        %1081 = vmatpush1.bf16.msra.mxu0 0
        %1082 = vmatprep.subr.bf16.mxu0 0
        %1083 = vmatpush1.bf16.msra.mxu0 0
        %1084 = vmatprep.subr.bf16.mxu0 0
        %1085 = vmatpush1.bf16.msra.mxu0 0
        %1086 = vmatprep.subr.bf16.mxu0 0
        %1087 = vmatpush1.bf16.msra.mxu0 0
        %1088 = vmatprep.subr.bf16.mxu0 0
        %1089 = vmatpush1.bf16.msra.mxu0 0
        %1090 = vmatprep.subr.bf16.mxu0 0
        %1091 = vmatpush1.bf16.msra.mxu0 0
        %1092 = vmatprep.subr.bf16.mxu0 0
        %1093 = vmatpush1.bf16.msra.mxu0 0
        %1094 = vmatprep.subr.bf16.mxu0 0
        %1095 = vmatpush1.bf16.msra.mxu0 0
        %1096 = vmatprep.subr.bf16.mxu0 0
        %1097 = vmatpush1.bf16.msra.mxu0 0
        %1098 = vmatprep.subr.bf16.mxu0 0
        %1099 = vmatpush1.bf16.msra.mxu0 0
        %1100 = vmatprep.subr.bf16.mxu0 0
        %1101 = vmatpush1.bf16.msra.mxu0 0
        %1102 = vmatprep.mubr.bf16.mxu0 0
        %1103 = vmatmul.mubr.bf16.gmra.mrb[0].mxu0 %v1065
        %v1104 = vpop.f32.mrb[0].mxu0
        %v1105 = vadd.f32 0.0, %v1104
        %v1106 = vpop.f32.mrb[0].mxu0
        %v1107 = vpop.f32.mrb[0].mxu0
        %v1108 = vpop.f32.mrb[0].mxu0
        %1109 = vdwg.mxu0
        %1111 = vrot.lane.b32.xlu0 %v1105, 64
        %v1112 = vpop.permute.xlu0 %1111
        %vm1114 = vcmask 785920
        %1115 = vst.msk [vmem:[#allocation2] sm:$0xff] %vm1114, %v1112
        %1116 = vrot.lane.b32.xlu0 %v764, 32
        %v1117 = vpop.permute.xlu0 %1116
        %1118 = vrot.lane.b32.xlu0 %v765, 32
        %v1119 = vpop.permute.xlu0 %1118
        %v1121 = vsel %vm767, %v1117, 0
        %v1124 = vsel %vm767, %v1119, 0
        %1126 = vmatprep.subr.bf16.mxu0 0
        %1127 = vmatpush1.bf16.xpose.msra.mxu0 %v1124
        %1128 = vmatprep.subr.bf16.mxu0 0
        %1129 = vmatpush1.bf16.xpose.msra.mxu0 0
        %1130 = vmatprep.subr.bf16.mxu0 0
        %1131 = vmatpush1.bf16.xpose.msra.mxu0 0
        %1132 = vmatprep.subr.bf16.mxu0 0
        %1133 = vmatpush1.bf16.xpose.msra.mxu0 0
        %1134 = vmatprep.subr.bf16.mxu0 0
        %1135 = vmatpush1.bf16.xpose.msra.mxu0 0
        %1136 = vmatprep.subr.bf16.mxu0 0
        %1137 = vmatpush1.bf16.xpose.msra.mxu0 0
        %1138 = vmatprep.subr.bf16.mxu0 0
        %1139 = vmatpush1.bf16.xpose.msra.mxu0 0
        %1140 = vmatprep.subr.bf16.mxu0 0
        %1141 = vmatpush1.bf16.xpose.msra.mxu0 0
        %1142 = vmatprep.subr.bf16.mxu0 0
        %1143 = vmatpush1.bf16.xpose.msra.mxu0 0
        %1144 = vmatprep.subr.bf16.mxu0 0
        %1145 = vmatpush1.bf16.xpose.msra.mxu0 0
        %1146 = vmatprep.subr.bf16.mxu0 0
        %1147 = vmatpush1.bf16.xpose.msra.mxu0 0
        %1148 = vmatprep.subr.bf16.mxu0 0
        %1149 = vmatpush1.bf16.xpose.msra.mxu0 0
        %1150 = vmatprep.subr.bf16.mxu0 0
        %1151 = vmatpush1.bf16.xpose.msra.mxu0 0
        %1152 = vmatprep.subr.bf16.mxu0 0
        %1153 = vmatpush1.bf16.xpose.msra.mxu0 0
        %1154 = vmatprep.subr.bf16.mxu0 0
        %1155 = vmatpush1.bf16.xpose.msra.mxu0 0
        %1156 = vmatprep.subr.bf16.mxu0 0
        %1157 = vmatpush1.bf16.xpose.msra.mxu0 0
        %1158 = vmatprep.mubr.bf16.mxu0 0
        %1159 = vmatmul.mubr.bf16.gmra.mrb[0].mxu0 %v1121
        %v1160 = vpop.f32.mrb[0].mxu0
        %v1161 = vadd.f32 0.0, %v1160
        %v1162 = vpop.f32.mrb[0].mxu0
        %v1163 = vpop.f32.mrb[0].mxu0
        %v1164 = vpop.f32.mrb[0].mxu0
        %1165 = vdwg.mxu0
        %v1166 = vmul.f32 %v1161, 0.17677669
        %v1167 = vsel %vm763, %v1166, -1e+30
        %v1168 = vsel %vm816, %v1167, -inf
        %1169 = vmax.xlane.f32.xlu0 %v1168
        %v1170 = vpop.xlane.xlu0 %1169
        %v1171 = vsub.f32 %v1167, %v1170
        %v1172 = vmul.f32 %v1171, 1.442695
        %v1173 = vpow.pop %v1172
        %v1174 = vsel %vm816, %v1173, 0.0
        %1175 = vadd.xlane.f32.xlu0 %v1174
        %v1176 = vpop.xlane.xlu0 %1175
        %v1177 = vrcp.pop %v1176
        %v1178 = vmul.f32 %v1173, %v1177
        %v1179 = vpack.c.bf16 %v1178, %v1178
        %1180 = vrot.lane.b32.xlu0 %v766, 32
        %v1181 = vpop.permute.xlu0 %1180
        %v1183 = vsel %vm816, %v1179, 0
        %v1186 = vsel %vm832, %v1181, 0
        %1188 = vmatprep.subr.bf16.mxu0 0
        %1189 = vmatpush1.bf16.msra.mxu0 %v1186
        %1190 = vmatprep.subr.bf16.mxu0 0
        %1191 = vmatpush1.bf16.msra.mxu0 0
        %1192 = vmatprep.subr.bf16.mxu0 0
        %1193 = vmatpush1.bf16.msra.mxu0 0
        %1194 = vmatprep.subr.bf16.mxu0 0
        %1195 = vmatpush1.bf16.msra.mxu0 0
        %1196 = vmatprep.subr.bf16.mxu0 0
        %1197 = vmatpush1.bf16.msra.mxu0 0
        %1198 = vmatprep.subr.bf16.mxu0 0
        %1199 = vmatpush1.bf16.msra.mxu0 0
        %1200 = vmatprep.subr.bf16.mxu0 0
        %1201 = vmatpush1.bf16.msra.mxu0 0
        %1202 = vmatprep.subr.bf16.mxu0 0
        %1203 = vmatpush1.bf16.msra.mxu0 0
        %1204 = vmatprep.subr.bf16.mxu0 0
        %1205 = vmatpush1.bf16.msra.mxu0 0
        %1206 = vmatprep.subr.bf16.mxu0 0
        %1207 = vmatpush1.bf16.msra.mxu0 0
        %1208 = vmatprep.subr.bf16.mxu0 0
        %1209 = vmatpush1.bf16.msra.mxu0 0
        %1210 = vmatprep.subr.bf16.mxu0 0
        %1211 = vmatpush1.bf16.msra.mxu0 0
        %1212 = vmatprep.subr.bf16.mxu0 0
        %1213 = vmatpush1.bf16.msra.mxu0 0
        %1214 = vmatprep.subr.bf16.mxu0 0
        %1215 = vmatpush1.bf16.msra.mxu0 0
        %1216 = vmatprep.subr.bf16.mxu0 0
        %1217 = vmatpush1.bf16.msra.mxu0 0
        %1218 = vmatprep.subr.bf16.mxu0 0
        %1219 = vmatpush1.bf16.msra.mxu0 0
        %1220 = vmatprep.mubr.bf16.mxu0 0
        %1221 = vmatmul.mubr.bf16.gmra.mrb[0].mxu0 %v1183
        %v1222 = vpop.f32.mrb[0].mxu0
        %v1223 = vadd.f32 0.0, %v1222
        %v1224 = vpop.f32.mrb[0].mxu0
        %v1225 = vpop.f32.mrb[0].mxu0
        %v1226 = vpop.f32.mrb[0].mxu0
        %1227 = vdwg.mxu0
        %1229 = vrot.lane.b32.xlu0 %v1223, 96
        %v1230 = vpop.permute.xlu0 %1229
        %vm1232 = vcmask 1048320
        %1233 = vst.msk [vmem:[#allocation2] sm:$0xff] %vm1232, %v1230
        %v1234 = vld [vmem:[#allocation2] sm:$0xff]
        %v1235 = vpack.c.bf16 %v1234, %v1234
        %v1236 = vld [vmem:[#allocation8] sm:$0xf]
        %v1237 = vld [vmem:[#allocation8 + $0x4] sm:$0xf]
        %v1238 = vld [vmem:[#allocation8 + $0x8] sm:$0xf]
        %v1239 = vld [vmem:[#allocation8 + $0xc] sm:$0xf]
        %v1240 = vld [vmem:[#allocation8 + $0x10] sm:$0xf]
        %v1241 = vld [vmem:[#allocation8 + $0x14] sm:$0xf]
        %v1242 = vld [vmem:[#allocation8 + $0x18] sm:$0xf]
        %v1243 = vld [vmem:[#allocation8 + $0x1c] sm:$0xf]
        %v1244 = vld [vmem:[#allocation8 + $0x20] sm:$0xf]
        %v1245 = vld [vmem:[#allocation8 + $0x24] sm:$0xf]
        %v1246 = vld [vmem:[#allocation8 + $0x28] sm:$0xf]
        %v1247 = vld [vmem:[#allocation8 + $0x2c] sm:$0xf]
        %v1248 = vld [vmem:[#allocation8 + $0x30] sm:$0xf]
        %v1249 = vld [vmem:[#allocation8 + $0x34] sm:$0xf]
        %v1250 = vld [vmem:[#allocation8 + $0x38] sm:$0xf]
        %v1251 = vld [vmem:[#allocation8 + $0x3c] sm:$0xf]
        %v1252 = vld [vmem:[%s5] sm:$0x1]
        %v1254 = vlaneseq
        %v1255 = vshrl.u32 %v1254, 7
        %v1256 = vsub.s32 0, %v1255
        %v1257 = vrot.slane %v1252, %v1256
        %v1275 = vunpack.c.l.b16 %v1236
        %v1276 = vunpack.c.l.b16 %v1237
        %v1277 = vunpack.c.l.b16 %v1238
        %v1278 = vunpack.c.l.b16 %v1239
        %v1279 = vunpack.c.l.b16 %v1240
        %v1280 = vunpack.c.l.b16 %v1241
        %v1281 = vunpack.c.l.b16 %v1242
        %v1282 = vunpack.c.l.b16 %v1243
        %v1283 = vunpack.c.l.b16 %v1244
        %v1284 = vunpack.c.l.b16 %v1245
        %v1285 = vunpack.c.l.b16 %v1246
        %v1286 = vunpack.c.l.b16 %v1247
        %v1287 = vunpack.c.l.b16 %v1248
        %v1288 = vunpack.c.l.b16 %v1249
        %v1289 = vunpack.c.l.b16 %v1250
        %v1290 = vunpack.c.l.b16 %v1251
        %v1291 = vpack.c.b16 %v1276, %v1275
        %v1292 = vpack.c.b16 %v1278, %v1277
        %v1293 = vpack.c.b16 %v1280, %v1279
        %v1294 = vpack.c.b16 %v1282, %v1281
        %v1295 = vpack.c.b16 %v1284, %v1283
        %v1296 = vpack.c.b16 %v1286, %v1285
        %v1297 = vpack.c.b16 %v1288, %v1287
        %v1298 = vpack.c.b16 %v1290, %v1289
        %1307 = vmatprep.subr.bf16.mxu0 0
        %1308 = vmatpush1.bf16.msra.mxu0 %v1291
        %1309 = vmatprep.subr.bf16.mxu0 0
        %1310 = vmatpush1.bf16.msra.mxu0 %v1292
        %1311 = vmatprep.subr.bf16.mxu0 0
        %1312 = vmatpush1.bf16.msra.mxu0 %v1293
        %1313 = vmatprep.subr.bf16.mxu0 0
        %1314 = vmatpush1.bf16.msra.mxu0 %v1294
        %1315 = vmatprep.subr.bf16.mxu0 0
        %1316 = vmatpush1.bf16.msra.mxu0 %v1295
        %1317 = vmatprep.subr.bf16.mxu0 0
        %1318 = vmatpush1.bf16.msra.mxu0 %v1296
        %1319 = vmatprep.subr.bf16.mxu0 0
        %1320 = vmatpush1.bf16.msra.mxu0 %v1297
        %1321 = vmatprep.subr.bf16.mxu0 0
        %1322 = vmatpush1.bf16.msra.mxu0 %v1298
        %1323 = vmatprep.subr.bf16.mxu0 0
        %1324 = vmatpush1.bf16.msra.mxu0 0
        %1325 = vmatprep.subr.bf16.mxu0 0
        %1326 = vmatpush1.bf16.msra.mxu0 0
        %1327 = vmatprep.subr.bf16.mxu0 0
        %1328 = vmatpush1.bf16.msra.mxu0 0
        %1329 = vmatprep.subr.bf16.mxu0 0
        %1330 = vmatpush1.bf16.msra.mxu0 0
        %1331 = vmatprep.subr.bf16.mxu0 0
        %1332 = vmatpush1.bf16.msra.mxu0 0
        %1333 = vmatprep.subr.bf16.mxu0 0
        %1334 = vmatpush1.bf16.msra.mxu0 0
        %1335 = vmatprep.subr.bf16.mxu0 0
        %1336 = vmatpush1.bf16.msra.mxu0 0
        %1337 = vmatprep.subr.bf16.mxu0 0
        %1338 = vmatpush1.bf16.msra.mxu0 0
        %1339 = vmatprep.mubr.bf16.mxu0 0
        %1340 = vmatmul.mubr.bf16.gmra.mrb[0].mxu0 %v1235
        %v1341 = vpop.f32.mrb[0].mxu0
        %v1342 = vadd.f32 %v1257, %v1341
        %v1343 = vpop.f32.mrb[0].mxu0
        %v1344 = vpop.f32.mrb[0].mxu0
        %v1345 = vpop.f32.mrb[0].mxu0
        %1346 = vdwg.mxu0
        %v1347 = vadd.f32 %v1342, %v488
        %v1348 = vld [vmem:[%s6] sm:$0x1]
        %v1349 = vld [vmem:[%s7] sm:$0x1]
        %1350 = vadd.xlane.f32.xlu0 %v1347
        %v1351 = vpop.xlane.xlu0 %1350
        %v1352 = vmul.f32 %v1351, %v493
        %v1353 = vsub.f32 %v1347, %v1352
        %v1354 = vmul.f32 %v1353, %v1353
        %1355 = vadd.xlane.f32.xlu0 %v1354
        %v1356 = vpop.xlane.xlu0 %1355
        %v1357 = vmul.f32 %v1356, %v493
        %v1358 = vadd.f32 %v1357, 1e-05
        %v1359 = vrsqrt.pop %v1358
        %v1360 = vmul.f32 %v1353, %v1359
        %v1362 = vlaneseq
        %v1363 = vshrl.u32 %v1362, 7
        %v1364 = vsub.s32 0, %v1363
        %v1365 = vrot.slane %v1348, %v1364
        %v1367 = vmul.f32 %v1360, %v1365
        %v1369 = vlaneseq
        %v1370 = vshrl.u32 %v1369, 7
        %v1371 = vsub.s32 0, %v1370
        %v1372 = vrot.slane %v1349, %v1371
        %v1374 = vadd.f32 %v1367, %v1372
        %v1375 = vpack.c.bf16 %v1374, %v1374
        %v1376 = vld [vmem:[#allocation9] sm:$0xff]
        %v1377 = vld [vmem:[#allocation9 + $0x8] sm:$0xff]
        %v1378 = vld [vmem:[#allocation9 + $0x10] sm:$0xff]
        %v1379 = vld [vmem:[#allocation9 + $0x18] sm:$0xff]
        %v1380 = vld [vmem:[#allocation9 + $0x20] sm:$0xff]
        %v1381 = vld [vmem:[#allocation9 + $0x28] sm:$0xff]
        %v1382 = vld [vmem:[#allocation9 + $0x30] sm:$0xff]
        %v1383 = vld [vmem:[#allocation9 + $0x38] sm:$0xff]
        %v1384 = vld [vmem:[#allocation9 + $0x40] sm:$0xff]
        %v1385 = vld [vmem:[#allocation9 + $0x48] sm:$0xff]
        %v1386 = vld [vmem:[#allocation9 + $0x50] sm:$0xff]
        %v1387 = vld [vmem:[#allocation9 + $0x58] sm:$0xff]
        %v1388 = vld [vmem:[#allocation9 + $0x60] sm:$0xff]
        %v1389 = vld [vmem:[#allocation9 + $0x68] sm:$0xff]
        %v1390 = vld [vmem:[#allocation9 + $0x70] sm:$0xff]
        %v1391 = vld [vmem:[#allocation9 + $0x78] sm:$0xff]
        %v1392 = vld [vmem:[#allocation9 + $0x80] sm:$0xff]
        %v1393 = vld [vmem:[#allocation9 + $0x88] sm:$0xff]
        %v1394 = vld [vmem:[#allocation9 + $0x90] sm:$0xff]
        %v1395 = vld [vmem:[#allocation9 + $0x98] sm:$0xff]
        %v1396 = vld [vmem:[#allocation9 + $0xa0] sm:$0xff]
        %v1397 = vld [vmem:[#allocation9 + $0xa8] sm:$0xff]
        %v1398 = vld [vmem:[#allocation9 + $0xb0] sm:$0xff]
        %v1399 = vld [vmem:[#allocation9 + $0xb8] sm:$0xff]
        %v1400 = vld [vmem:[#allocation9 + $0xc0] sm:$0xff]
        %v1401 = vld [vmem:[#allocation9 + $0xc8] sm:$0xff]
        %v1402 = vld [vmem:[#allocation9 + $0xd0] sm:$0xff]
        %v1403 = vld [vmem:[#allocation9 + $0xd8] sm:$0xff]
        %v1404 = vld [vmem:[#allocation9 + $0xe0] sm:$0xff]
        %v1405 = vld [vmem:[#allocation9 + $0xe8] sm:$0xff]
        %v1406 = vld [vmem:[#allocation9 + $0xf0] sm:$0xff]
        %v1407 = vld [vmem:[#allocation9 + $0xf8] sm:$0xff]
        %v1408 = vld [vmem:[%s9] sm:$0xf]
        %v1410 = vlaneseq
        %v1411 = vshrl.u32 %v1410, 7
        %v1412 = vsub.s32 0, %v1411
        %v1413 = vrot.slane %v1408, %v1412
        %v1414 = vlaneseq
        %v1415 = vshrl.u32 %v1414, 7
        %v1416 = vsub.s32 1, %v1415
        %v1417 = vrot.slane %v1408, %v1416
        %v1418 = vlaneseq
        %v1419 = vshrl.u32 %v1418, 7
        %v1420 = vsub.s32 2, %v1419
        %v1421 = vrot.slane %v1408, %v1420
        %v1422 = vlaneseq
        %v1423 = vshrl.u32 %v1422, 7
        %v1424 = vsub.s32 3, %v1423
        %v1425 = vrot.slane %v1408, %v1424
        %v1462 = vunpack.c.l.b16 %v1376
        %v1463 = vunpack.c.h.b16 %v1376
        %v1464 = vunpack.c.l.b16 %v1377
        %v1465 = vunpack.c.h.b16 %v1377
        %v1466 = vunpack.c.l.b16 %v1378
        %v1467 = vunpack.c.h.b16 %v1378
        %v1468 = vunpack.c.l.b16 %v1379
        %v1469 = vunpack.c.h.b16 %v1379
        %v1470 = vunpack.c.l.b16 %v1380
        %v1471 = vunpack.c.h.b16 %v1380
        %v1472 = vunpack.c.l.b16 %v1381
        %v1473 = vunpack.c.h.b16 %v1381
        %v1474 = vunpack.c.l.b16 %v1382
        %v1475 = vunpack.c.h.b16 %v1382
        %v1476 = vunpack.c.l.b16 %v1383
        %v1477 = vunpack.c.h.b16 %v1383
        %v1478 = vunpack.c.l.b16 %v1384
        %v1479 = vunpack.c.h.b16 %v1384
        %v1480 = vunpack.c.l.b16 %v1385
        %v1481 = vunpack.c.h.b16 %v1385
        %v1482 = vunpack.c.l.b16 %v1386
        %v1483 = vunpack.c.h.b16 %v1386
        %v1484 = vunpack.c.l.b16 %v1387
        %v1485 = vunpack.c.h.b16 %v1387
        %v1486 = vunpack.c.l.b16 %v1388
        %v1487 = vunpack.c.h.b16 %v1388
        %v1488 = vunpack.c.l.b16 %v1389
        %v1489 = vunpack.c.h.b16 %v1389
        %v1490 = vunpack.c.l.b16 %v1390
        %v1491 = vunpack.c.h.b16 %v1390
        %v1492 = vunpack.c.l.b16 %v1391
        %v1493 = vunpack.c.h.b16 %v1391
        %v1494 = vunpack.c.l.b16 %v1392
        %v1495 = vunpack.c.h.b16 %v1392
        %v1496 = vunpack.c.l.b16 %v1393
        %v1497 = vunpack.c.h.b16 %v1393
        %v1498 = vunpack.c.l.b16 %v1394
        %v1499 = vunpack.c.h.b16 %v1394
        %v1500 = vunpack.c.l.b16 %v1395
        %v1501 = vunpack.c.h.b16 %v1395
        %v1502 = vunpack.c.l.b16 %v1396
        %v1503 = vunpack.c.h.b16 %v1396
        %v1504 = vunpack.c.l.b16 %v1397
        %v1505 = vunpack.c.h.b16 %v1397
        %v1506 = vunpack.c.l.b16 %v1398
        %v1507 = vunpack.c.h.b16 %v1398
        %v1508 = vunpack.c.l.b16 %v1399
        %v1509 = vunpack.c.h.b16 %v1399
        %v1510 = vunpack.c.l.b16 %v1400
        %v1511 = vunpack.c.h.b16 %v1400
        %v1512 = vunpack.c.l.b16 %v1401
        %v1513 = vunpack.c.h.b16 %v1401
        %v1514 = vunpack.c.l.b16 %v1402
        %v1515 = vunpack.c.h.b16 %v1402
        %v1516 = vunpack.c.l.b16 %v1403
        %v1517 = vunpack.c.h.b16 %v1403
        %v1518 = vunpack.c.l.b16 %v1404
        %v1519 = vunpack.c.h.b16 %v1404
        %v1520 = vunpack.c.l.b16 %v1405
        %v1521 = vunpack.c.h.b16 %v1405
        %v1522 = vunpack.c.l.b16 %v1406
        %v1523 = vunpack.c.h.b16 %v1406
        %v1524 = vunpack.c.l.b16 %v1407
        %v1525 = vunpack.c.h.b16 %v1407
        %v1526 = vpack.c.b16 %v1466, %v1462
        %v1527 = vpack.c.b16 %v1467, %v1463
        %v1528 = vpack.c.b16 %v1468, %v1464
        %v1529 = vpack.c.b16 %v1469, %v1465
        %v1530 = vpack.c.b16 %v1474, %v1470
        %v1531 = vpack.c.b16 %v1475, %v1471
        %v1532 = vpack.c.b16 %v1476, %v1472
        %v1533 = vpack.c.b16 %v1477, %v1473
        %v1534 = vpack.c.b16 %v1482, %v1478
        %v1535 = vpack.c.b16 %v1483, %v1479
        %v1536 = vpack.c.b16 %v1484, %v1480
        %v1537 = vpack.c.b16 %v1485, %v1481
        %v1538 = vpack.c.b16 %v1490, %v1486
        %v1539 = vpack.c.b16 %v1491, %v1487
        %v1540 = vpack.c.b16 %v1492, %v1488
        %v1541 = vpack.c.b16 %v1493, %v1489
        %v1542 = vpack.c.b16 %v1498, %v1494
        %v1543 = vpack.c.b16 %v1499, %v1495
        %v1544 = vpack.c.b16 %v1500, %v1496
        %v1545 = vpack.c.b16 %v1501, %v1497
        %v1546 = vpack.c.b16 %v1506, %v1502
        %v1547 = vpack.c.b16 %v1507, %v1503
        %v1548 = vpack.c.b16 %v1508, %v1504
        %v1549 = vpack.c.b16 %v1509, %v1505
        %v1550 = vpack.c.b16 %v1514, %v1510
        %v1551 = vpack.c.b16 %v1515, %v1511
        %v1552 = vpack.c.b16 %v1516, %v1512
        %v1553 = vpack.c.b16 %v1517, %v1513
        %v1554 = vpack.c.b16 %v1522, %v1518
        %v1555 = vpack.c.b16 %v1523, %v1519
        %v1556 = vpack.c.b16 %v1524, %v1520
        %v1557 = vpack.c.b16 %v1525, %v1521
        %1590 = vmatprep.subr.bf16.mxu0 %v1527
        %1591 = vmatpush1.bf16.msra.mxu0 %v1526
        %1592 = vmatprep.subr.bf16.mxu0 %v1531
        %1593 = vmatpush1.bf16.msra.mxu0 %v1530
        %1594 = vmatprep.subr.bf16.mxu0 %v1535
        %1595 = vmatpush1.bf16.msra.mxu0 %v1534
        %1596 = vmatprep.subr.bf16.mxu0 %v1539
        %1597 = vmatpush1.bf16.msra.mxu0 %v1538
        %1598 = vmatprep.subr.bf16.mxu0 %v1543
        %1599 = vmatpush1.bf16.msra.mxu0 %v1542
        %1600 = vmatprep.subr.bf16.mxu0 %v1547
        %1601 = vmatpush1.bf16.msra.mxu0 %v1546
        %1602 = vmatprep.subr.bf16.mxu0 %v1551
        %1603 = vmatpush1.bf16.msra.mxu0 %v1550
        %1604 = vmatprep.subr.bf16.mxu0 %v1555
        %1605 = vmatpush1.bf16.msra.mxu0 %v1554
        %1606 = vmatprep.subr.bf16.mxu0 0
        %1607 = vmatpush1.bf16.msra.mxu0 0
        %1608 = vmatprep.subr.bf16.mxu0 0
        %1609 = vmatpush1.bf16.msra.mxu0 0
        %1610 = vmatprep.subr.bf16.mxu0 0
        %1611 = vmatpush1.bf16.msra.mxu0 0
        %1612 = vmatprep.subr.bf16.mxu0 0
        %1613 = vmatpush1.bf16.msra.mxu0 0
        %1614 = vmatprep.subr.bf16.mxu0 0
        %1615 = vmatpush1.bf16.msra.mxu0 0
        %1616 = vmatprep.subr.bf16.mxu0 0
        %1617 = vmatpush1.bf16.msra.mxu0 0
        %1618 = vmatprep.subr.bf16.mxu0 0
        %1619 = vmatpush1.bf16.msra.mxu0 0
        %1620 = vmatprep.subr.bf16.mxu0 0
        %1621 = vmatpush1.bf16.msra.mxu0 0
        %1622 = vmatprep.mubr.bf16.mxu0 0
        %1623 = vmatmul.mubr.bf16.gmra.mrb[0].mxu0 %v1375
        %v1624 = vpop.f32.mrb[0].mxu0
        %v1625 = vadd.f32 %v1413, %v1624
        %v1626 = vpop.f32.mrb[0].mxu0
        %v1627 = vadd.f32 %v1417, %v1626
        %v1628 = vpop.f32.mrb[0].mxu0
        %v1629 = vpop.f32.mrb[0].mxu0
        %1630 = vdwg.mxu0
        %1631 = vmatprep.subr.bf16.mxu0 %v1529
        %1632 = vmatpush1.bf16.msra.mxu0 %v1528
        %1633 = vmatprep.subr.bf16.mxu0 %v1533
        %1634 = vmatpush1.bf16.msra.mxu0 %v1532
        %1635 = vmatprep.subr.bf16.mxu0 %v1537
        %1636 = vmatpush1.bf16.msra.mxu0 %v1536
        %1637 = vmatprep.subr.bf16.mxu0 %v1541
        %1638 = vmatpush1.bf16.msra.mxu0 %v1540
        %1639 = vmatprep.subr.bf16.mxu0 %v1545
        %1640 = vmatpush1.bf16.msra.mxu0 %v1544
        %1641 = vmatprep.subr.bf16.mxu0 %v1549
        %1642 = vmatpush1.bf16.msra.mxu0 %v1548
        %1643 = vmatprep.subr.bf16.mxu0 %v1553
        %1644 = vmatpush1.bf16.msra.mxu0 %v1552
        %1645 = vmatprep.subr.bf16.mxu0 %v1557
        %1646 = vmatpush1.bf16.msra.mxu0 %v1556
        %1647 = vmatprep.subr.bf16.mxu0 0
        %1648 = vmatpush1.bf16.msra.mxu0 0
        %1649 = vmatprep.subr.bf16.mxu0 0
        %1650 = vmatpush1.bf16.msra.mxu0 0
        %1651 = vmatprep.subr.bf16.mxu0 0
        %1652 = vmatpush1.bf16.msra.mxu0 0
        %1653 = vmatprep.subr.bf16.mxu0 0
        %1654 = vmatpush1.bf16.msra.mxu0 0
        %1655 = vmatprep.subr.bf16.mxu0 0
        %1656 = vmatpush1.bf16.msra.mxu0 0
        %1657 = vmatprep.subr.bf16.mxu0 0
        %1658 = vmatpush1.bf16.msra.mxu0 0
        %1659 = vmatprep.subr.bf16.mxu0 0
        %1660 = vmatpush1.bf16.msra.mxu0 0
        %1661 = vmatprep.subr.bf16.mxu0 0
        %1662 = vmatpush1.bf16.msra.mxu0 0
        %1663 = vmatprep.mubr.bf16.mxu0 0
        %1664 = vmatmul.mubr.bf16.gmra.mrb[0].mxu0 %v1375
        %v1665 = vpop.f32.mrb[0].mxu0
        %v1666 = vadd.f32 %v1421, %v1665
        %v1667 = vpop.f32.mrb[0].mxu0
        %v1668 = vadd.f32 %v1425, %v1667
        %v1669 = vpop.f32.mrb[0].mxu0
        %v1670 = vpop.f32.mrb[0].mxu0
        %1671 = vdwg.mxu0
        %v1672 = vmul.f32 %v1625, 0.5
        %v1673 = vmul.f32 %v1627, 0.5
        %v1674 = vmul.f32 %v1666, 0.5
        %v1675 = vmul.f32 %v1668, 0.5
        %v1676 = vmul.f32 %v1625, 0.044715
        %v1677 = vmul.f32 %v1627, 0.044715
        %v1678 = vmul.f32 %v1666, 0.044715
        %v1679 = vmul.f32 %v1668, 0.044715
        %v1680 = vmul.f32 %v1676, %v1625
        %v1681 = vmul.f32 %v1677, %v1627
        %v1682 = vmul.f32 %v1678, %v1666
        %v1683 = vmul.f32 %v1679, %v1668
        %v1684 = vmul.f32 %v1680, %v1625
        %v1685 = vmul.f32 %v1681, %v1627
        %v1686 = vmul.f32 %v1682, %v1666
        %v1687 = vmul.f32 %v1683, %v1668
        %v1688 = vadd.f32 %v1625, %v1684
        %v1689 = vadd.f32 %v1627, %v1685
        %v1690 = vadd.f32 %v1666, %v1686
        %v1691 = vadd.f32 %v1668, %v1687
        %v1692 = vmul.f32 %v1688, 0.7978846
        %v1693 = vmul.f32 %v1689, 0.7978846
        %v1694 = vmul.f32 %v1690, 0.7978846
        %v1695 = vmul.f32 %v1691, 0.7978846
        %v1696 = vtanh.pop %v1692
        %v1697 = vtanh.pop %v1693
        %v1698 = vtanh.pop %v1694
        %v1699 = vtanh.pop %v1695
        %v1700 = vadd.f32 %v1696, 1.0
        %v1701 = vadd.f32 %v1697, 1.0
        %v1702 = vadd.f32 %v1698, 1.0
        %v1703 = vadd.f32 %v1699, 1.0
        %v1704 = vmul.f32 %v1672, %v1700
        %v1705 = vmul.f32 %v1673, %v1701
        %v1706 = vmul.f32 %v1674, %v1702
        %v1707 = vmul.f32 %v1675, %v1703
        %v1708 = vpack.c.bf16 %v1704, %v1704
        %v1709 = vpack.c.bf16 %v1705, %v1705
        %v1710 = vpack.c.bf16 %v1706, %v1706
        %v1711 = vpack.c.bf16 %v1707, %v1707
        %v1712 = vld [vmem:[#allocation11] sm:$0xf]
        %v1713 = vld [vmem:[#allocation11 + $0x4] sm:$0xf]
        %v1714 = vld [vmem:[#allocation11 + $0x8] sm:$0xf]
        %v1715 = vld [vmem:[#allocation11 + $0xc] sm:$0xf]
        %v1716 = vld [vmem:[#allocation11 + $0x10] sm:$0xf]
        %v1717 = vld [vmem:[#allocation11 + $0x14] sm:$0xf]
        %v1718 = vld [vmem:[#allocation11 + $0x18] sm:$0xf]
        %v1719 = vld [vmem:[#allocation11 + $0x1c] sm:$0xf]
        %v1720 = vld [vmem:[#allocation11 + $0x20] sm:$0xf]
        %v1721 = vld [vmem:[#allocation11 + $0x24] sm:$0xf]
        %v1722 = vld [vmem:[#allocation11 + $0x28] sm:$0xf]
        %v1723 = vld [vmem:[#allocation11 + $0x2c] sm:$0xf]
        %v1724 = vld [vmem:[#allocation11 + $0x30] sm:$0xf]
        %v1725 = vld [vmem:[#allocation11 + $0x34] sm:$0xf]
        %v1726 = vld [vmem:[#allocation11 + $0x38] sm:$0xf]
        %v1727 = vld [vmem:[#allocation11 + $0x3c] sm:$0xf]
        %v1728 = vld [vmem:[#allocation11 + $0x40] sm:$0xf]
        %v1729 = vld [vmem:[#allocation11 + $0x44] sm:$0xf]
        %v1730 = vld [vmem:[#allocation11 + $0x48] sm:$0xf]
        %v1731 = vld [vmem:[#allocation11 + $0x4c] sm:$0xf]
        %v1732 = vld [vmem:[#allocation11 + $0x50] sm:$0xf]
        %v1733 = vld [vmem:[#allocation11 + $0x54] sm:$0xf]
        %v1734 = vld [vmem:[#allocation11 + $0x58] sm:$0xf]
        %v1735 = vld [vmem:[#allocation11 + $0x5c] sm:$0xf]
        %v1736 = vld [vmem:[#allocation11 + $0x60] sm:$0xf]
        %v1737 = vld [vmem:[#allocation11 + $0x64] sm:$0xf]
        %v1738 = vld [vmem:[#allocation11 + $0x68] sm:$0xf]
        %v1739 = vld [vmem:[#allocation11 + $0x6c] sm:$0xf]
        %v1740 = vld [vmem:[#allocation11 + $0x70] sm:$0xf]
        %v1741 = vld [vmem:[#allocation11 + $0x74] sm:$0xf]
        %v1742 = vld [vmem:[#allocation11 + $0x78] sm:$0xf]
        %v1743 = vld [vmem:[#allocation11 + $0x7c] sm:$0xf]
        %v1744 = vld [vmem:[#allocation11 + $0x80] sm:$0xf]
        %v1745 = vld [vmem:[#allocation11 + $0x84] sm:$0xf]
        %v1746 = vld [vmem:[#allocation11 + $0x88] sm:$0xf]
        %v1747 = vld [vmem:[#allocation11 + $0x8c] sm:$0xf]
        %v1748 = vld [vmem:[#allocation11 + $0x90] sm:$0xf]
        %v1749 = vld [vmem:[#allocation11 + $0x94] sm:$0xf]
        %v1750 = vld [vmem:[#allocation11 + $0x98] sm:$0xf]
        %v1751 = vld [vmem:[#allocation11 + $0x9c] sm:$0xf]
        %v1752 = vld [vmem:[#allocation11 + $0xa0] sm:$0xf]
        %v1753 = vld [vmem:[#allocation11 + $0xa4] sm:$0xf]
        %v1754 = vld [vmem:[#allocation11 + $0xa8] sm:$0xf]
        %v1755 = vld [vmem:[#allocation11 + $0xac] sm:$0xf]
        %v1756 = vld [vmem:[#allocation11 + $0xb0] sm:$0xf]
        %v1757 = vld [vmem:[#allocation11 + $0xb4] sm:$0xf]
        %v1758 = vld [vmem:[#allocation11 + $0xb8] sm:$0xf]
        %v1759 = vld [vmem:[#allocation11 + $0xbc] sm:$0xf]
        %v1760 = vld [vmem:[#allocation11 + $0xc0] sm:$0xf]
        %v1761 = vld [vmem:[#allocation11 + $0xc4] sm:$0xf]
        %v1762 = vld [vmem:[#allocation11 + $0xc8] sm:$0xf]
        %v1763 = vld [vmem:[#allocation11 + $0xcc] sm:$0xf]
        %v1764 = vld [vmem:[#allocation11 + $0xd0] sm:$0xf]
        %v1765 = vld [vmem:[#allocation11 + $0xd4] sm:$0xf]
        %v1766 = vld [vmem:[#allocation11 + $0xd8] sm:$0xf]
        %v1767 = vld [vmem:[#allocation11 + $0xdc] sm:$0xf]
        %v1768 = vld [vmem:[#allocation11 + $0xe0] sm:$0xf]
        %v1769 = vld [vmem:[#allocation11 + $0xe4] sm:$0xf]
        %v1770 = vld [vmem:[#allocation11 + $0xe8] sm:$0xf]
        %v1771 = vld [vmem:[#allocation11 + $0xec] sm:$0xf]
        %v1772 = vld [vmem:[#allocation11 + $0xf0] sm:$0xf]
        %v1773 = vld [vmem:[#allocation11 + $0xf4] sm:$0xf]
        %v1774 = vld [vmem:[#allocation11 + $0xf8] sm:$0xf]
        %v1775 = vld [vmem:[#allocation11 + $0xfc] sm:$0xf]
        %v1776 = vld [vmem:[%s11] sm:$0x1]
        %v1778 = vlaneseq
        %v1779 = vshrl.u32 %v1778, 7
        %v1780 = vsub.s32 0, %v1779
        %v1781 = vrot.slane %v1776, %v1780
        %v1847 = vunpack.c.l.b16 %v1712
        %v1848 = vunpack.c.l.b16 %v1713
        %v1849 = vunpack.c.l.b16 %v1714
        %v1850 = vunpack.c.l.b16 %v1715
        %v1851 = vunpack.c.l.b16 %v1716
        %v1852 = vunpack.c.l.b16 %v1717
        %v1853 = vunpack.c.l.b16 %v1718
        %v1854 = vunpack.c.l.b16 %v1719
        %v1855 = vunpack.c.l.b16 %v1720
        %v1856 = vunpack.c.l.b16 %v1721
        %v1857 = vunpack.c.l.b16 %v1722
        %v1858 = vunpack.c.l.b16 %v1723
        %v1859 = vunpack.c.l.b16 %v1724
        %v1860 = vunpack.c.l.b16 %v1725
        %v1861 = vunpack.c.l.b16 %v1726
        %v1862 = vunpack.c.l.b16 %v1727
        %v1863 = vunpack.c.l.b16 %v1728
        %v1864 = vunpack.c.l.b16 %v1729
        %v1865 = vunpack.c.l.b16 %v1730
        %v1866 = vunpack.c.l.b16 %v1731
        %v1867 = vunpack.c.l.b16 %v1732
        %v1868 = vunpack.c.l.b16 %v1733
        %v1869 = vunpack.c.l.b16 %v1734
        %v1870 = vunpack.c.l.b16 %v1735
        %v1871 = vunpack.c.l.b16 %v1736
        %v1872 = vunpack.c.l.b16 %v1737
        %v1873 = vunpack.c.l.b16 %v1738
        %v1874 = vunpack.c.l.b16 %v1739
        %v1875 = vunpack.c.l.b16 %v1740
        %v1876 = vunpack.c.l.b16 %v1741
        %v1877 = vunpack.c.l.b16 %v1742
        %v1878 = vunpack.c.l.b16 %v1743
        %v1879 = vunpack.c.l.b16 %v1744
        %v1880 = vunpack.c.l.b16 %v1745
        %v1881 = vunpack.c.l.b16 %v1746
        %v1882 = vunpack.c.l.b16 %v1747
        %v1883 = vunpack.c.l.b16 %v1748
        %v1884 = vunpack.c.l.b16 %v1749
        %v1885 = vunpack.c.l.b16 %v1750
        %v1886 = vunpack.c.l.b16 %v1751
        %v1887 = vunpack.c.l.b16 %v1752
        %v1888 = vunpack.c.l.b16 %v1753
        %v1889 = vunpack.c.l.b16 %v1754
        %v1890 = vunpack.c.l.b16 %v1755
        %v1891 = vunpack.c.l.b16 %v1756
        %v1892 = vunpack.c.l.b16 %v1757
        %v1893 = vunpack.c.l.b16 %v1758
        %v1894 = vunpack.c.l.b16 %v1759
        %v1895 = vunpack.c.l.b16 %v1760
        %v1896 = vunpack.c.l.b16 %v1761
        %v1897 = vunpack.c.l.b16 %v1762
        %v1898 = vunpack.c.l.b16 %v1763
        %v1899 = vunpack.c.l.b16 %v1764
        %v1900 = vunpack.c.l.b16 %v1765
        %v1901 = vunpack.c.l.b16 %v1766
        %v1902 = vunpack.c.l.b16 %v1767
        %v1903 = vunpack.c.l.b16 %v1768
        %v1904 = vunpack.c.l.b16 %v1769
        %v1905 = vunpack.c.l.b16 %v1770
        %v1906 = vunpack.c.l.b16 %v1771
        %v1907 = vunpack.c.l.b16 %v1772
        %v1908 = vunpack.c.l.b16 %v1773
        %v1909 = vunpack.c.l.b16 %v1774
        %v1910 = vunpack.c.l.b16 %v1775
        %v1911 = vpack.c.b16 %v1848, %v1847
        %v1912 = vpack.c.b16 %v1850, %v1849
        %v1913 = vpack.c.b16 %v1852, %v1851
        %v1914 = vpack.c.b16 %v1854, %v1853
        %v1915 = vpack.c.b16 %v1856, %v1855
        %v1916 = vpack.c.b16 %v1858, %v1857
        %v1917 = vpack.c.b16 %v1860, %v1859
        %v1918 = vpack.c.b16 %v1862, %v1861
        %v1919 = vpack.c.b16 %v1864, %v1863
        %v1920 = vpack.c.b16 %v1866, %v1865
        %v1921 = vpack.c.b16 %v1868, %v1867
        %v1922 = vpack.c.b16 %v1870, %v1869
        %v1923 = vpack.c.b16 %v1872, %v1871
        %v1924 = vpack.c.b16 %v1874, %v1873
        %v1925 = vpack.c.b16 %v1876, %v1875
        %v1926 = vpack.c.b16 %v1878, %v1877
        %v1927 = vpack.c.b16 %v1880, %v1879
        %v1928 = vpack.c.b16 %v1882, %v1881
        %v1929 = vpack.c.b16 %v1884, %v1883
        %v1930 = vpack.c.b16 %v1886, %v1885
        %v1931 = vpack.c.b16 %v1888, %v1887
        %v1932 = vpack.c.b16 %v1890, %v1889
        %v1933 = vpack.c.b16 %v1892, %v1891
        %v1934 = vpack.c.b16 %v1894, %v1893
        %v1935 = vpack.c.b16 %v1896, %v1895
        %v1936 = vpack.c.b16 %v1898, %v1897
        %v1937 = vpack.c.b16 %v1900, %v1899
        %v1938 = vpack.c.b16 %v1902, %v1901
        %v1939 = vpack.c.b16 %v1904, %v1903
        %v1940 = vpack.c.b16 %v1906, %v1905
        %v1941 = vpack.c.b16 %v1908, %v1907
        %v1942 = vpack.c.b16 %v1910, %v1909
        %1975 = vmatprep.subr.bf16.mxu0 0
        %1976 = vmatpush1.bf16.msra.mxu0 %v1911
        %1977 = vmatprep.subr.bf16.mxu0 0
        %1978 = vmatpush1.bf16.msra.mxu0 %v1912
        %1979 = vmatprep.subr.bf16.mxu0 0
        %1980 = vmatpush1.bf16.msra.mxu0 %v1913
        %1981 = vmatprep.subr.bf16.mxu0 0
        %1982 = vmatpush1.bf16.msra.mxu0 %v1914
        %1983 = vmatprep.subr.bf16.mxu0 0
        %1984 = vmatpush1.bf16.msra.mxu0 %v1915
        %1985 = vmatprep.subr.bf16.mxu0 0
        %1986 = vmatpush1.bf16.msra.mxu0 %v1916
        %1987 = vmatprep.subr.bf16.mxu0 0
        %1988 = vmatpush1.bf16.msra.mxu0 %v1917
        %1989 = vmatprep.subr.bf16.mxu0 0
        %1990 = vmatpush1.bf16.msra.mxu0 %v1918
        %1991 = vmatprep.subr.bf16.mxu0 0
        %1992 = vmatpush1.bf16.msra.mxu0 %v1919
        %1993 = vmatprep.subr.bf16.mxu0 0
        %1994 = vmatpush1.bf16.msra.mxu0 %v1920
        %1995 = vmatprep.subr.bf16.mxu0 0
        %1996 = vmatpush1.bf16.msra.mxu0 %v1921
        %1997 = vmatprep.subr.bf16.mxu0 0
        %1998 = vmatpush1.bf16.msra.mxu0 %v1922
        %1999 = vmatprep.subr.bf16.mxu0 0
        %2000 = vmatpush1.bf16.msra.mxu0 %v1923
        %2001 = vmatprep.subr.bf16.mxu0 0
        %2002 = vmatpush1.bf16.msra.mxu0 %v1924
        %2003 = vmatprep.subr.bf16.mxu0 0
        %2004 = vmatpush1.bf16.msra.mxu0 %v1925
        %2005 = vmatprep.subr.bf16.mxu0 0
        %2006 = vmatpush1.bf16.msra.mxu0 %v1926
        %2007 = vmatprep.mubr.bf16.mxu0 %v1709
        %2008 = vmatmul.mubr.bf16.gmra.mrb[0].mxu0 %v1708
        %v2009 = vpop.f32.mrb[0].mxu0
        %v2010 = vadd.f32 %v1781, %v2009
        %v2011 = vpop.f32.mrb[0].mxu0
        %v2012 = vpop.f32.mrb[0].mxu0
        %v2013 = vpop.f32.mrb[0].mxu0
        %2014 = vdwg.mxu0
        %2015 = vmatprep.subr.bf16.mxu0 0
        %2016 = vmatpush1.bf16.msra.mxu0 %v1927
        %2017 = vmatprep.subr.bf16.mxu0 0
        %2018 = vmatpush1.bf16.msra.mxu0 %v1928
        %2019 = vmatprep.subr.bf16.mxu0 0
        %2020 = vmatpush1.bf16.msra.mxu0 %v1929
        %2021 = vmatprep.subr.bf16.mxu0 0
        %2022 = vmatpush1.bf16.msra.mxu0 %v1930
        %2023 = vmatprep.subr.bf16.mxu0 0
        %2024 = vmatpush1.bf16.msra.mxu0 %v1931
        %2025 = vmatprep.subr.bf16.mxu0 0
        %2026 = vmatpush1.bf16.msra.mxu0 %v1932
        %2027 = vmatprep.subr.bf16.mxu0 0
        %2028 = vmatpush1.bf16.msra.mxu0 %v1933
        %2029 = vmatprep.subr.bf16.mxu0 0
        %2030 = vmatpush1.bf16.msra.mxu0 %v1934
        %2031 = vmatprep.subr.bf16.mxu0 0
        %2032 = vmatpush1.bf16.msra.mxu0 %v1935
        %2033 = vmatprep.subr.bf16.mxu0 0
        %2034 = vmatpush1.bf16.msra.mxu0 %v1936
        %2035 = vmatprep.subr.bf16.mxu0 0
        %2036 = vmatpush1.bf16.msra.mxu0 %v1937
        %2037 = vmatprep.subr.bf16.mxu0 0
        %2038 = vmatpush1.bf16.msra.mxu0 %v1938
        %2039 = vmatprep.subr.bf16.mxu0 0
        %2040 = vmatpush1.bf16.msra.mxu0 %v1939
        %2041 = vmatprep.subr.bf16.mxu0 0
        %2042 = vmatpush1.bf16.msra.mxu0 %v1940
        %2043 = vmatprep.subr.bf16.mxu0 0
        %2044 = vmatpush1.bf16.msra.mxu0 %v1941
        %2045 = vmatprep.subr.bf16.mxu0 0
        %2046 = vmatpush1.bf16.msra.mxu0 %v1942
        %2047 = vmatprep.mubr.bf16.mxu0 %v1711
        %2048 = vmatmul.mubr.bf16.gmra.mrb[0].mxu0 %v1710
        %v2049 = vpop.f32.mrb[0].mxu0
        %v2050 = vadd.f32 %v2010, %v2049
        %v2051 = vpop.f32.mrb[0].mxu0
        %v2052 = vpop.f32.mrb[0].mxu0
        %v2053 = vpop.f32.mrb[0].mxu0
        %2054 = vdwg.mxu0
        %v2055 = vadd.f32 %v2050, %v1347
        %2056 = vst [vmem:[%s486] sm:$0xff] %v2055
        %s2057 = sand.u32 %s296, 1
        %s2058 = scalar_lea.sflag [#allocation5], %s2057
        %s2059 = sand.u32 %s296, 1
        %s2060 = smul.addr %s2059, 8
        %s2061 = scalar_lea.vmem [#allocation12], %s2060
        // Predicated region
        $region89: #{tpu_custom_call.1} parent=67 // pred_check
          %p2062 = pneg %p306
        $region90: #{tpu_custom_call.1} parent=67 // pred_check_branch
          %2064 = sbr.rel (%p2062) target = $region92
        $region91: #{tpu_custom_call.1} parent=67 // pred_region
          %s2066 = ssub.s32 128, 128
          %2067 = vsyncadd %s2058, %s2066
          %s2068 = smul.addr %s31, 128
          %s2069 = scalar_lea.hbm %s12, %s2068
          %s2071 = sshll.u32 %s2061, 4
          %s2072 = int_to_ptr.vmem [resolvable:$true] %s2071
          %2074 = dma.vmem_to_hbm [thread:$0]  %s2072, 128, %s2069, %s2058
        $region92: #{tpu_custom_call.1} parent=67 // pred_fallthru
          _
      $region68: #{tpu_custom_call.1} parent=5 // pred_fallthru
        _
      %p2075 = scmp.le.s32.totalorder 2, %s26
      // Predicated region
      $region93: #{tpu_custom_call.1} parent=5 // pred_check
        %p2076 = pneg %p2075
      $region94: #{tpu_custom_call.1} parent=5 // pred_check_branch
        %2078 = sbr.rel (%p2076) target = $region96
      $region95: #{tpu_custom_call.1} parent=5 // pred_region
        %s2079 = ssub.s32 %s26, 2
        // Predicated region
        $region97: #{tpu_custom_call.1} parent=95 // pred_check
          %p2080 = pneg %p312
        $region98: #{tpu_custom_call.1} parent=95 // pred_check_branch
          %2082 = sbr.rel (%p2080) target = $region100
        $region99: #{tpu_custom_call.1} parent=95 // pred_region
          %s2083 = sand.u32 %s297, 1
          %s2084 = scalar_lea.sflag [#allocation5], %s2083
          %s2085 = sand.u32 %s297, 1
          %s2086 = smul.addr %s2085, 8
          %s2087 = scalar_lea.vmem [#allocation12], %s2086
          %2088 = dma.done %s2084, 128
        $region100: #{tpu_custom_call.1} parent=95 // pred_fallthru
          _
      $region96: #{tpu_custom_call.1} parent=5 // pred_fallthru
        _
    $region6: #{tpu_custom_call.1} parent=1 // loop_footer
      %s30 = sadd.s32 1, %s26
    $region7: #{tpu_custom_call.1} parent=1 // loop_footer_branch
      %25 = sbr.rel target = $region3
    $region8: #{tpu_custom_call.1} parent=1 // loop_exit
      _
    %2089 = vsyncpa [#allocation4], 1
    %s2090 = scalar_lea.sflag [#allocation4], 1
    %2091 = vsyncpa %s2090, 1
    %2092 = vsyncpa [#allocation7], 1
    %2093 = vsyncpa [#allocation10], 1
    %2094 = vsyncpa [#allocation5], 1
    %s2095 = scalar_lea.sflag [#allocation5], 1
    %2096 = vsyncpa %s2095, 1

</llo_original>
